<compile_context>
chip_gen: v6e
topology: v6e:2x2x1
jax: 0.10.0
libtpu: 0.0.40
codegen_flags: <defaults>
</compile_context>

<pallas_src>
import functools

import numpy as np
import jax
import jax.numpy as jnp
from jax.experimental import pallas as pl
from jax.experimental.pallas import tpu as pltpu

# ---------------------------------------------------------------------------
# Constant tables from MyModel.__init__
# ---------------------------------------------------------------------------
TEMP_SET = np.array([18.0, 20, 22, 24, 26, 28, 30, 31.5, 32], dtype=np.float32)
TEMP_ENVR = np.array(
    [-30.0, -20, -10, 0, 5, 10, 15, 20, 25, 30, 35, 40, 45, 50], dtype=np.float32
)
CABIN_SP = np.array(
    [
        [17.0, 17, 17, 17, 17, 17, 17, 17, 17, 17, 17, 17, 17, 17],
        [20, 20, 19.5, 19.5, 19.5, 19, 19, 19, 18.5, 18.5, 18, 18, 18, 18],
        [22, 22, 22, 22.5, 22.5, 22.5, 22, 22, 21, 21, 21, 21, 20.5, 20],
        [24, 24.5, 25.5, 25.5, 26, 26, 25.5, 25, 24.5, 24, 23.5, 23, 23, 23],
        [27, 26.5, 27, 27.5, 28, 28, 27.5, 27, 26.5, 26, 25.5, 26, 26, 26],
        [29, 28.5, 28.5, 29.5, 30, 30, 29.5, 29, 29, 29, 28, 28, 29, 29],
        [31, 30.5, 30.5, 31.5, 32, 32, 32, 31, 31, 31, 31, 31, 31, 31],
        [32, 32, 32, 33, 33, 33, 33, 33, 33, 33, 33, 33, 32, 32],
        [32, 32, 36, 36, 36, 36, 36, 36, 36, 36, 36, 36, 36, 36],
    ],
    dtype=np.float32,
)

HIDDEN = 512
OUT_PAD = 128      # lane-dense output padding (true output is column 0)
BN_EPS = 1e-5


# ---------------------------------------------------------------------------
# In-kernel helpers (all VPU / XLU, no MXU)
# ---------------------------------------------------------------------------
def _hat_weights(q, axis_pack):
    """Piecewise-linear interpolation basis weights (gather-free).

    q:         [B, 1]  query values
    axis_pack: [3, n]  rows = (t, t_prev, t_next) of the sorted axis table
    returns    [B, n]  weights s.t.  interp(q) = sum_j w_j * f(t_j)   (clamped at ends)
    """
    t = axis_pack[0:1, :]
    t_prev = axis_pack[1:2, :]
    t_next = axis_pack[2:3, :]
    n = t.shape[1]
    qc = jnp.clip(q, t[:, 0:1], t[:, n - 1 : n])
    dl = t - t_prev
    dr = t_next - t
    left = jnp.where(dl == 0.0, 1.0, (qc - t_prev) / jnp.where(dl == 0.0, 1.0, dl))
    right = jnp.where(dr == 0.0, 1.0, (t_next - qc) / jnp.where(dr == 0.0, 1.0, dr))
    return jnp.clip(jnp.minimum(left, right), 0.0, 1.0)


# ---------------------------------------------------------------------------
# Pallas kernel: feature construction (inter2D) + 3-layer MLP (BN folded)
# ---------------------------------------------------------------------------
def _model_kernel(
    x_ref,       # [TB, 15]  f32
    tset_ref,    # [3, 9]    f32   temp_set / prev / next
    tenv_ref,    # [3, 14]   f32   temp_envr / prev / next
    cabt_ref,    # [14, 9]   f32   CabinSP table, transposed (envr-major)
    w1_ref,      # [4, 512]  f32   (BN1 folded)
    b1_ref,      # [1, 512]  f32
    w2_ref,      # [512,512] bf16  (BN2 folded)
    b2_ref,      # [1, 512]  f32
    w3_ref,      # [512,128] bf16  (zero-padded beyond column 0)
    b3_ref,      # [1, 128]  f32   (zero-padded beyond column 0)
    out_ref,     # [TB, 128] f32
    *,
    act_dtype,   # jnp.bfloat16 (default) or jnp.float32 (v5e)
):
    x = x_ref[...]
    temp_amb = x[:, 1:2]
    cab_fl_set = x[:, 2:3]
    cab_fr_set = x[:, 3:4]
    temp_incar = x[:, 8:9]
    temp_batt_req = x[:, 9:10]
    temp_cool_in = x[:, 10:11]

    wy = _hat_weights(temp_amb, tenv_ref[...])        # [TB, 14]
    wx_fl = _hat_weights(cab_fl_set, tset_ref[...])   # [TB, 9]
    wx_fr = _hat_weights(cab_fr_set, tset_ref[...])   # [TB, 9]

    # Bilinear interp, gather- and MXU-free:
    #   cw[b, i] = sum_j wy[b, j] * CabinSP[i, j]   (14 VPU broadcast-FMAs, shared)
    #   sp[b]    = sum_i wx[b, i] * cw[b, i]        (tiny lane reduction)
    cab_t = cabt_ref[...]                             # [14, 9]
    cw = wy[:, 0:1] * cab_t[0:1, :]
    for j in range(1, cab_t.shape[0]):
        cw = cw + wy[:, j : j + 1] * cab_t[j : j + 1, :]
    sp_fl = jnp.sum(wx_fl * cw, axis=-1, keepdims=True)   # [TB, 1]
    sp_fr = jnp.sum(wx_fr * cw, axis=-1, keepdims=True)   # [TB, 1]

    dvt_fl = sp_fl - temp_incar
    dvt_fr = sp_fr - temp_incar
    dct = temp_batt_req - temp_cool_in

    # Layer 1: [TB,4] @ [4,512] expressed as 4 VPU broadcast-FMAs (K=4 is MXU-hostile
    # and this avoids concatenating four lane-width-1 columns).
    w1 = w1_ref[...]
    h1_pre = (
        dvt_fl * w1[0:1, :]
        + dvt_fr * w1[1:2, :]
        + temp_amb * w1[2:3, :]
        + dct * w1[3:4, :]
        + b1_ref[...]
    )
    # tanh in act_dtype (bf16 by default: halves EUP work on v6e/v7x; the MXU
    # operands are bf16 immediately afterwards anyway).
    h1 = jnp.tanh(h1_pre.astype(act_dtype))           # [TB, 512]

    # Layer 2: bf16 operands, f32 accumulation on the MXU; bias add in f32.
    h2_pre = (
        jnp.dot(h1.astype(jnp.bfloat16), w2_ref[...],
                preferred_element_type=jnp.float32)
        + b2_ref[...]
    )
    h2 = jnp.tanh(h2_pre.astype(act_dtype))           # [TB, 512]

    # Layer 3: lane-dense (128-wide, zero-padded) output store.
    out_ref[...] = (
        jnp.dot(h2.astype(jnp.bfloat16), w3_ref[...],
                preferred_element_type=jnp.float32)
        + b3_ref[...]
    )


# ---------------------------------------------------------------------------
# JAX glue: parameter setup and pallas_call wrapper
# ---------------------------------------------------------------------------
def _pack_axis(t):
    t_prev = np.concatenate([t[:1], t[:-1]])
    t_next = np.concatenate([t[1:], t[-1:]])
    return np.stack([t, t_prev, t_next]).astype(np.float32)


def _xavier_uniform(key, fan_in, fan_out):
    bound = float(np.sqrt(6.0 / (fan_in + fan_out)))
    return jax.random.uniform(
        key, (fan_in, fan_out), jnp.float32, minval=-bound, maxval=bound
    )


def init_params(key):
    k1, k2, k3 = jax.random.split(key, 3)
    w1 = _xavier_uniform(k1, 4, HIDDEN)
    w2 = _xavier_uniform(k2, HIDDEN, HIDDEN)
    w3 = _xavier_uniform(k3, HIDDEN, 1)
    # Eval-mode BatchNorm1d fold: running_mean=0, running_var=1, gamma=1, beta=0,
    # zero Linear biases (matches init_weights_xavier_uniform at init time).
    # TODO(synk): for a trained checkpoint, fold the real BN buffers (running_mean,
    # beta, nonzero biases) into b1/b2 as well — the w-scale alone is not sufficient.
    bn_scale = jnp.float32(1.0 / np.sqrt(1.0 + BN_EPS))
    w1f = (w1 * bn_scale).astype(jnp.float32)                 # stays f32 (VPU layer)
    w2f = (w2 * bn_scale).astype(jnp.bfloat16)                # MXU operand -> bf16
    w3p = (
        jnp.zeros((HIDDEN, OUT_PAD), jnp.float32).at[:, 0:1].set(w3)
    ).astype(jnp.bfloat16)                                    # lane-dense padded, bf16
    return dict(
        w1=w1f,
        b1=jnp.zeros((1, HIDDEN), jnp.float32),
        w2=w2f,
        b2=jnp.zeros((1, HIDDEN), jnp.float32),
        w3p=w3p,
        b3p=jnp.zeros((1, OUT_PAD), jnp.float32),
    )


def _round_up(n, m):
    return ((n + m - 1) // m) * m


def my_model_forward(x, params, *, tile=1024, bf16_act=True):
    """x: [B, 15] f32  ->  AC_KpRate [B, 1] f32.

    bf16_act=True (default) runs the tanh activations in bf16 (v6e/v7x EUP fast
    path); set False on v5e to keep f32 activations.
    """
    assert tile % 8 == 0, "batch tile must be a multiple of 8 (sublane constraint)"
    B = x.shape[0]
    if B > 128:
        # Guarantee >= 2 grid steps so the "parallel" batch axis can shard across
        # both TensorCores on v7x (and the pipeline has something to overlap).
        TB = min(tile, _round_up(pl.cdiv(B, 2), 8))
    else:
        TB = min(tile, _round_up(B, 8))
    TB = max(TB, 8)
    Bp = _round_up(B, TB)
    if Bp != B:
        x = jnp.pad(x, ((0, Bp - B), (0, 0)))
    grid = (Bp // TB,)

    tset_pack = jnp.asarray(_pack_axis(TEMP_SET))
    tenv_pack = jnp.asarray(_pack_axis(TEMP_ENVR))
    cab_t = jnp.asarray(CABIN_SP.T.copy())            # [14, 9] envr-major

    const_map = lambda i: (0, 0)   # weights / tables: resident across grid steps
    in_specs = [
        pl.BlockSpec((TB, 15), lambda i: (i, 0)),          # x (batch-tiled)
        pl.BlockSpec((3, 9), const_map),                   # temp_set pack
        pl.BlockSpec((3, 14), const_map),                  # temp_envr pack
        pl.BlockSpec((14, 9), const_map),                  # CabinSP table (transposed)
        pl.BlockSpec((4, HIDDEN), const_map),              # w1 (f32)
        pl.BlockSpec((1, HIDDEN), const_map),              # b1
        pl.BlockSpec((HIDDEN, HIDDEN), const_map),         # w2 (bf16)
        pl.BlockSpec((1, HIDDEN), const_map),              # b2
        pl.BlockSpec((HIDDEN, OUT_PAD), const_map),        # w3 padded (bf16)
        pl.BlockSpec((1, OUT_PAD), const_map),             # b3 padded
    ]
    out_specs = pl.BlockSpec((TB, OUT_PAD), lambda i: (i, 0))

    flops = int(
        Bp * (2 * 4 * HIDDEN + 2 * HIDDEN * HIDDEN + 2 * HIDDEN * OUT_PAD
              + (2 * 14 * 9 + 2 * 2 * 9 + 200))          # interp + hat weights (VPU)
    )
    transcendentals = int(2 * Bp * HIDDEN)
    bytes_accessed = int(
        Bp * 15 * 4 + Bp * OUT_PAD * 4
        + HIDDEN * HIDDEN * 2 + HIDDEN * OUT_PAD * 2
        + 4 * HIDDEN * 4 + 3 * HIDDEN * 4 + OUT_PAD * 4
    )

    kernel = functools.partial(
        _model_kernel,
        act_dtype=jnp.bfloat16 if bf16_act else jnp.float32,
    )

    out = pl.pallas_call(
        kernel,
        out_shape=jax.ShapeDtypeStruct((Bp, OUT_PAD), jnp.float32),
        grid_spec=pltpu.PrefetchScalarGridSpec(
            num_scalar_prefetch=0,
            grid=grid,
            in_specs=in_specs,
            out_specs=out_specs,
        ),
        compiler_params=pltpu.CompilerParams(
            dimension_semantics=("parallel",),   # batch axis shards across TCs on v7x
            vmem_limit_bytes=32 * 1024 * 1024,   # headroom for TB=1024 on v5e
        ),
        cost_estimate=pl.CostEstimate(
            flops=flops,
            transcendentals=transcendentals,
            bytes_accessed=bytes_accessed,
        ),
    )(
        x, tset_pack, tenv_pack, cab_t,
        params["w1"], params["b1"],
        params["w2"], params["b2"],
        params["w3p"], params["b3p"],
    )
    return out[:B, :1]


# ---------------------------------------------------------------------------
# Reference for validation:
#  * features via an independent numpy searchsorted bilinear interp (float64)
#  * MLP via plain XLA ops mirroring the kernel numerics (bf16 activations,
#    bf16 MXU operands, f32 accumulation) — validates the Pallas tiling/structure
# ---------------------------------------------------------------------------
def _ref_inter2d(xt, yt, table, xq, yq):
    xq = np.clip(xq, xt[0], xt[-1])
    yq = np.clip(yq, yt[0], yt[-1])
    ix = np.clip(np.searchsorted(xt, xq, side="right") - 1, 0, len(xt) - 2)
    iy = np.clip(np.searchsorted(yt, yq, side="right") - 1, 0, len(yt) - 2)
    tx = (xq - xt[ix]) / (xt[ix + 1] - xt[ix])
    ty = (yq - yt[iy]) / (yt[iy + 1] - yt[iy])
    v00, v01 = table[ix, iy], table[ix, iy + 1]
    v10, v11 = table[ix + 1, iy], table[ix + 1, iy + 1]
    return (1 - tx) * (1 - ty) * v00 + (1 - tx) * ty * v01 + tx * (1 - ty) * v10 + tx * ty * v11


def _ref_forward(x, params, bf16_act=True):
    xn = np.asarray(x, np.float64)
    temp_amb = xn[:, 1]
    sp_fl = _ref_inter2d(TEMP_SET, TEMP_ENVR, CABIN_SP, xn[:, 2], temp_amb)
    sp_fr = _ref_inter2d(TEMP_SET, TEMP_ENVR, CABIN_SP, xn[:, 3], temp_amb)
    dvt_fl = sp_fl - xn[:, 8]
    dvt_fr = sp_fr - xn[:, 8]
    dct = xn[:, 9] - xn[:, 10]
    feat = jnp.asarray(
        np.stack([dvt_fl, dvt_fr, temp_amb, dct], axis=1), jnp.float32
    )
    act = jnp.bfloat16 if bf16_act else jnp.float32
    h1 = jnp.tanh((feat @ params["w1"] + params["b1"]).astype(act))
    h2 = jnp.tanh(
        (jnp.dot(h1.astype(jnp.bfloat16), params["w2"],
                 preferred_element_type=jnp.float32) + params["b2"]).astype(act)
    )
    out = (
        jnp.dot(h2.astype(jnp.bfloat16), params["w3p"],
                preferred_element_type=jnp.float32)
        + params["b3p"]
    )
    return np.asarray(out[:, :1], np.float64)


# ---------------------------------------------------------------------------
if __name__ == "__main__":
    key = jax.random.PRNGKey(0)
    k_in, k_in2, k_param = jax.random.split(key, 3)

    # The 15 input signals in physically reasonable ranges.
    lo = jnp.array(
        [800, -40, 18, 18, 100, 900, 100, 900, -10, 10, 5, 0, -10, -10, -10],
        jnp.float32,
    )
    hi = jnp.array(
        [8500, 55, 32, 32, 700, 2400, 700, 2400, 40, 30, 30, 2, 60, 60, 60],
        jnp.float32,
    )

    params = init_params(k_param)

    # Check 1: small batch, small tile -> padding (50 -> 64) + 4-step grid.
    B = 50
    x = lo + jax.random.uniform(k_in, (B, 15), jnp.float32) * (hi - lo)
    out = jax.block_until_ready(my_model_forward(x, params, tile=16))
    assert out.shape == (B, 1)
    ref = _ref_forward(x, params)
    # bf16 activations + bf16 MXU operands (f32 accumulation): tolerance covers
    # the HW-vs-XLA bf16 tanh difference propagated through two 512-wide layers.
    np.testing.assert_allclose(np.asarray(out), ref, rtol=1e-2, atol=1.5e-2)

    # Check 2: B > 128 with the default tile -> the >=2-grid-step (two-TC) path.
    B2 = 300
    x2 = lo + jax.random.uniform(k_in2, (B2, 15), jnp.float32) * (hi - lo)
    out2 = jax.block_until_ready(my_model_forward(x2, params))
    assert out2.shape == (B2, 1)
    ref2 = _ref_forward(x2, params)
    np.testing.assert_allclose(np.asarray(out2), ref2, rtol=1e-2, atol=1.5e-2)

    print("KERNEL_OK")
</pallas_src>

<mosaic_0001>
module attributes {stable_mosaic.version = 11 : i64} {
  func.func @_model_kernel(%arg0: i32, %arg1: memref<16x15xf32, #tpu.memory_space<vmem>>, %arg2: memref<3x9xf32, #tpu.memory_space<vmem>>, %arg3: memref<3x14xf32, #tpu.memory_space<vmem>>, %arg4: memref<14x9xf32, #tpu.memory_space<vmem>>, %arg5: memref<4x512xf32, #tpu.memory_space<vmem>>, %arg6: memref<1x512xf32, #tpu.memory_space<vmem>>, %arg7: memref<512x512xbf16, #tpu.memory_space<vmem>>, %arg8: memref<1x512xf32, #tpu.memory_space<vmem>>, %arg9: memref<512x128xbf16, #tpu.memory_space<vmem>>, %arg10: memref<1x128xf32, #tpu.memory_space<vmem>>, %arg11: memref<16x128xf32, #tpu.memory_space<vmem>>) attributes {dimension_semantics = [#tpu.dimension_semantics<parallel>], iteration_bounds = array<i64: 4>, scalar_prefetch = 0 : i64, scratch_operands = 0 : i64, tpu.core_type = #tpu.core_type<tc>, window_params = [{transform_indices = @transform_0, window_bounds = array<i64: 16, 15>}, {pipeline_mode = #tpu.pipeline_mode<synchronous>, transform_indices = @transform_1, window_bounds = array<i64: 3, 9>}, {pipeline_mode = #tpu.pipeline_mode<synchronous>, transform_indices = @transform_2, window_bounds = array<i64: 3, 14>}, {pipeline_mode = #tpu.pipeline_mode<synchronous>, transform_indices = @transform_3, window_bounds = array<i64: 14, 9>}, {pipeline_mode = #tpu.pipeline_mode<synchronous>, transform_indices = @transform_4, window_bounds = array<i64: 4, 512>}, {pipeline_mode = #tpu.pipeline_mode<synchronous>, transform_indices = @transform_5, window_bounds = array<i64: 1, 512>}, {pipeline_mode = #tpu.pipeline_mode<synchronous>, transform_indices = @transform_6, window_bounds = array<i64: 512, 512>}, {pipeline_mode = #tpu.pipeline_mode<synchronous>, transform_indices = @transform_7, window_bounds = array<i64: 1, 512>}, {pipeline_mode = #tpu.pipeline_mode<synchronous>, transform_indices = @transform_8, window_bounds = array<i64: 512, 128>}, {pipeline_mode = #tpu.pipeline_mode<synchronous>, transform_indices = @transform_9, window_bounds = array<i64: 1, 128>}, {transform_indices = @transform_10, window_bounds = array<i64: 16, 128>}]} {
    %c0 = arith.constant 0 : index
    %c0_0 = arith.constant 0 : index
    %0 = vector.load %arg1[%c0, %c0_0] : memref<16x15xf32, #tpu.memory_space<vmem>>, vector<16x15xf32>
    %1 = vector.extract_strided_slice %0 {offsets = [0, 1], sizes = [16, 1], strides = [1, 1]} : vector<16x15xf32> to vector<16x1xf32>
    %2 = vector.extract_strided_slice %0 {offsets = [0, 2], sizes = [16, 1], strides = [1, 1]} : vector<16x15xf32> to vector<16x1xf32>
    %3 = vector.extract_strided_slice %0 {offsets = [0, 3], sizes = [16, 1], strides = [1, 1]} : vector<16x15xf32> to vector<16x1xf32>
    %4 = vector.extract_strided_slice %0 {offsets = [0, 8], sizes = [16, 1], strides = [1, 1]} : vector<16x15xf32> to vector<16x1xf32>
    %5 = vector.extract_strided_slice %0 {offsets = [0, 9], sizes = [16, 1], strides = [1, 1]} : vector<16x15xf32> to vector<16x1xf32>
    %6 = vector.extract_strided_slice %0 {offsets = [0, 10], sizes = [16, 1], strides = [1, 1]} : vector<16x15xf32> to vector<16x1xf32>
    %c0_1 = arith.constant 0 : index
    %c0_2 = arith.constant 0 : index
    %7 = vector.load %arg3[%c0_1, %c0_2] : memref<3x14xf32, #tpu.memory_space<vmem>>, vector<3x14xf32>
    %8 = vector.extract_strided_slice %7 {offsets = [0, 0], sizes = [1, 14], strides = [1, 1]} : vector<3x14xf32> to vector<1x14xf32>
    %9 = vector.extract_strided_slice %7 {offsets = [1, 0], sizes = [1, 14], strides = [1, 1]} : vector<3x14xf32> to vector<1x14xf32>
    %10 = vector.extract_strided_slice %7 {offsets = [2, 0], sizes = [1, 14], strides = [1, 1]} : vector<3x14xf32> to vector<1x14xf32>
    %11 = vector.extract_strided_slice %8 {offsets = [0, 0], sizes = [1, 1], strides = [1, 1]} : vector<1x14xf32> to vector<1x1xf32>
    %12 = vector.extract_strided_slice %8 {offsets = [0, 13], sizes = [1, 1], strides = [1, 1]} : vector<1x14xf32> to vector<1x1xf32>
    %13 = vector.broadcast %11 : vector<1x1xf32> to vector<16x1xf32>
    %14 = arith.maximumf %13, %1 : vector<16x1xf32>
    %15 = vector.broadcast %12 : vector<1x1xf32> to vector<16x1xf32>
    %16 = arith.minimumf %15, %14 : vector<16x1xf32>
    %17 = arith.subf %8, %9 : vector<1x14xf32>
    %18 = arith.subf %10, %8 : vector<1x14xf32>
    %cst = arith.constant 0.000000e+00 : f32
    %19 = vector.broadcast %cst : f32 to vector<1x14xf32>
    %20 = arith.cmpf oeq, %17, %19 : vector<1x14xf32>
    %21 = vector.broadcast %16 : vector<16x1xf32> to vector<16x14xf32>
    %22 = vector.broadcast %9 : vector<1x14xf32> to vector<16x14xf32>
    %23 = arith.subf %21, %22 : vector<16x14xf32>
    %cst_3 = arith.constant 0.000000e+00 : f32
    %24 = vector.broadcast %cst_3 : f32 to vector<1x14xf32>
    %25 = arith.cmpf oeq, %17, %24 : vector<1x14xf32>
    %cst_4 = arith.constant 1.000000e+00 : f32
    %26 = vector.broadcast %cst_4 : f32 to vector<1x14xf32>
    %27 = arith.select %25, %26, %17 : vector<1x14xi1>, vector<1x14xf32>
    %28 = vector.broadcast %27 : vector<1x14xf32> to vector<16x14xf32>
    %29 = arith.divf %23, %28 : vector<16x14xf32>
    %cst_5 = arith.constant 1.000000e+00 : f32
    %30 = vector.shape_cast %20 : vector<1x14xi1> to vector<1x14xi1>
    %31 = vector.broadcast %30 : vector<1x14xi1> to vector<16x14xi1>
    %32 = vector.broadcast %cst_5 : f32 to vector<16x14xf32>
    %33 = arith.select %31, %32, %29 : vector<16x14xi1>, vector<16x14xf32>
    %cst_6 = arith.constant 0.000000e+00 : f32
    %34 = vector.broadcast %cst_6 : f32 to vector<1x14xf32>
    %35 = arith.cmpf oeq, %18, %34 : vector<1x14xf32>
    %36 = vector.broadcast %10 : vector<1x14xf32> to vector<16x14xf32>
    %37 = vector.broadcast %16 : vector<16x1xf32> to vector<16x14xf32>
    %38 = arith.subf %36, %37 : vector<16x14xf32>
    %cst_7 = arith.constant 0.000000e+00 : f32
    %39 = vector.broadcast %cst_7 : f32 to vector<1x14xf32>
    %40 = arith.cmpf oeq, %18, %39 : vector<1x14xf32>
    %cst_8 = arith.constant 1.000000e+00 : f32
    %41 = vector.broadcast %cst_8 : f32 to vector<1x14xf32>
    %42 = arith.select %40, %41, %18 : vector<1x14xi1>, vector<1x14xf32>
    %43 = vector.broadcast %42 : vector<1x14xf32> to vector<16x14xf32>
    %44 = arith.divf %38, %43 : vector<16x14xf32>
    %cst_9 = arith.constant 1.000000e+00 : f32
    %45 = vector.shape_cast %35 : vector<1x14xi1> to vector<1x14xi1>
    %46 = vector.broadcast %45 : vector<1x14xi1> to vector<16x14xi1>
    %47 = vector.broadcast %cst_9 : f32 to vector<16x14xf32>
    %48 = arith.select %46, %47, %44 : vector<16x14xi1>, vector<16x14xf32>
    %49 = arith.minimumf %33, %48 : vector<16x14xf32>
    %cst_10 = arith.constant 0.000000e+00 : f32
    %cst_11 = arith.constant 1.000000e+00 : f32
    %50 = vector.broadcast %cst_10 : f32 to vector<16x14xf32>
    %51 = arith.maximumf %50, %49 : vector<16x14xf32>
    %52 = vector.broadcast %cst_11 : f32 to vector<16x14xf32>
    %53 = arith.minimumf %52, %51 : vector<16x14xf32>
    %c0_12 = arith.constant 0 : index
    %c0_13 = arith.constant 0 : index
    %54 = vector.load %arg2[%c0_12, %c0_13] : memref<3x9xf32, #tpu.memory_space<vmem>>, vector<3x9xf32>
    %55 = vector.extract_strided_slice %54 {offsets = [0, 0], sizes = [1, 9], strides = [1, 1]} : vector<3x9xf32> to vector<1x9xf32>
    %56 = vector.extract_strided_slice %54 {offsets = [1, 0], sizes = [1, 9], strides = [1, 1]} : vector<3x9xf32> to vector<1x9xf32>
    %57 = vector.extract_strided_slice %54 {offsets = [2, 0], sizes = [1, 9], strides = [1, 1]} : vector<3x9xf32> to vector<1x9xf32>
    %58 = vector.extract_strided_slice %55 {offsets = [0, 0], sizes = [1, 1], strides = [1, 1]} : vector<1x9xf32> to vector<1x1xf32>
    %59 = vector.extract_strided_slice %55 {offsets = [0, 8], sizes = [1, 1], strides = [1, 1]} : vector<1x9xf32> to vector<1x1xf32>
    %60 = vector.broadcast %58 : vector<1x1xf32> to vector<16x1xf32>
    %61 = arith.maximumf %60, %2 : vector<16x1xf32>
    %62 = vector.broadcast %59 : vector<1x1xf32> to vector<16x1xf32>
    %63 = arith.minimumf %62, %61 : vector<16x1xf32>
    %64 = arith.subf %55, %56 : vector<1x9xf32>
    %65 = arith.subf %57, %55 : vector<1x9xf32>
    %cst_14 = arith.constant 0.000000e+00 : f32
    %66 = vector.broadcast %cst_14 : f32 to vector<1x9xf32>
    %67 = arith.cmpf oeq, %64, %66 : vector<1x9xf32>
    %68 = vector.broadcast %63 : vector<16x1xf32> to vector<16x9xf32>
    %69 = vector.broadcast %56 : vector<1x9xf32> to vector<16x9xf32>
    %70 = arith.subf %68, %69 : vector<16x9xf32>
    %cst_15 = arith.constant 0.000000e+00 : f32
    %71 = vector.broadcast %cst_15 : f32 to vector<1x9xf32>
    %72 = arith.cmpf oeq, %64, %71 : vector<1x9xf32>
    %cst_16 = arith.constant 1.000000e+00 : f32
    %73 = vector.broadcast %cst_16 : f32 to vector<1x9xf32>
    %74 = arith.select %72, %73, %64 : vector<1x9xi1>, vector<1x9xf32>
    %75 = vector.broadcast %74 : vector<1x9xf32> to vector<16x9xf32>
    %76 = arith.divf %70, %75 : vector<16x9xf32>
    %cst_17 = arith.constant 1.000000e+00 : f32
    %77 = vector.shape_cast %67 : vector<1x9xi1> to vector<1x9xi1>
    %78 = vector.broadcast %77 : vector<1x9xi1> to vector<16x9xi1>
    %79 = vector.broadcast %cst_17 : f32 to vector<16x9xf32>
    %80 = arith.select %78, %79, %76 : vector<16x9xi1>, vector<16x9xf32>
    %cst_18 = arith.constant 0.000000e+00 : f32
    %81 = vector.broadcast %cst_18 : f32 to vector<1x9xf32>
    %82 = arith.cmpf oeq, %65, %81 : vector<1x9xf32>
    %83 = vector.broadcast %57 : vector<1x9xf32> to vector<16x9xf32>
    %84 = vector.broadcast %63 : vector<16x1xf32> to vector<16x9xf32>
    %85 = arith.subf %83, %84 : vector<16x9xf32>
    %cst_19 = arith.constant 0.000000e+00 : f32
    %86 = vector.broadcast %cst_19 : f32 to vector<1x9xf32>
    %87 = arith.cmpf oeq, %65, %86 : vector<1x9xf32>
    %cst_20 = arith.constant 1.000000e+00 : f32
    %88 = vector.broadcast %cst_20 : f32 to vector<1x9xf32>
    %89 = arith.select %87, %88, %65 : vector<1x9xi1>, vector<1x9xf32>
    %90 = vector.broadcast %89 : vector<1x9xf32> to vector<16x9xf32>
    %91 = arith.divf %85, %90 : vector<16x9xf32>
    %cst_21 = arith.constant 1.000000e+00 : f32
    %92 = vector.shape_cast %82 : vector<1x9xi1> to vector<1x9xi1>
    %93 = vector.broadcast %92 : vector<1x9xi1> to vector<16x9xi1>
    %94 = vector.broadcast %cst_21 : f32 to vector<16x9xf32>
    %95 = arith.select %93, %94, %91 : vector<16x9xi1>, vector<16x9xf32>
    %96 = arith.minimumf %80, %95 : vector<16x9xf32>
    %cst_22 = arith.constant 0.000000e+00 : f32
    %cst_23 = arith.constant 1.000000e+00 : f32
    %97 = vector.broadcast %cst_22 : f32 to vector<16x9xf32>
    %98 = arith.maximumf %97, %96 : vector<16x9xf32>
    %99 = vector.broadcast %cst_23 : f32 to vector<16x9xf32>
    %100 = arith.minimumf %99, %98 : vector<16x9xf32>
    %c0_24 = arith.constant 0 : index
    %c0_25 = arith.constant 0 : index
    %101 = vector.load %arg2[%c0_24, %c0_25] : memref<3x9xf32, #tpu.memory_space<vmem>>, vector<3x9xf32>
    %102 = vector.extract_strided_slice %101 {offsets = [0, 0], sizes = [1, 9], strides = [1, 1]} : vector<3x9xf32> to vector<1x9xf32>
    %103 = vector.extract_strided_slice %101 {offsets = [1, 0], sizes = [1, 9], strides = [1, 1]} : vector<3x9xf32> to vector<1x9xf32>
    %104 = vector.extract_strided_slice %101 {offsets = [2, 0], sizes = [1, 9], strides = [1, 1]} : vector<3x9xf32> to vector<1x9xf32>
    %105 = vector.extract_strided_slice %102 {offsets = [0, 0], sizes = [1, 1], strides = [1, 1]} : vector<1x9xf32> to vector<1x1xf32>
    %106 = vector.extract_strided_slice %102 {offsets = [0, 8], sizes = [1, 1], strides = [1, 1]} : vector<1x9xf32> to vector<1x1xf32>
    %107 = vector.broadcast %105 : vector<1x1xf32> to vector<16x1xf32>
    %108 = arith.maximumf %107, %3 : vector<16x1xf32>
    %109 = vector.broadcast %106 : vector<1x1xf32> to vector<16x1xf32>
    %110 = arith.minimumf %109, %108 : vector<16x1xf32>
    %111 = arith.subf %102, %103 : vector<1x9xf32>
    %112 = arith.subf %104, %102 : vector<1x9xf32>
    %cst_26 = arith.constant 0.000000e+00 : f32
    %113 = vector.broadcast %cst_26 : f32 to vector<1x9xf32>
    %114 = arith.cmpf oeq, %111, %113 : vector<1x9xf32>
    %115 = vector.broadcast %110 : vector<16x1xf32> to vector<16x9xf32>
    %116 = vector.broadcast %103 : vector<1x9xf32> to vector<16x9xf32>
    %117 = arith.subf %115, %116 : vector<16x9xf32>
    %cst_27 = arith.constant 0.000000e+00 : f32
    %118 = vector.broadcast %cst_27 : f32 to vector<1x9xf32>
    %119 = arith.cmpf oeq, %111, %118 : vector<1x9xf32>
    %cst_28 = arith.constant 1.000000e+00 : f32
    %120 = vector.broadcast %cst_28 : f32 to vector<1x9xf32>
    %121 = arith.select %119, %120, %111 : vector<1x9xi1>, vector<1x9xf32>
    %122 = vector.broadcast %121 : vector<1x9xf32> to vector<16x9xf32>
    %123 = arith.divf %117, %122 : vector<16x9xf32>
    %cst_29 = arith.constant 1.000000e+00 : f32
    %124 = vector.shape_cast %114 : vector<1x9xi1> to vector<1x9xi1>
    %125 = vector.broadcast %124 : vector<1x9xi1> to vector<16x9xi1>
    %126 = vector.broadcast %cst_29 : f32 to vector<16x9xf32>
    %127 = arith.select %125, %126, %123 : vector<16x9xi1>, vector<16x9xf32>
    %cst_30 = arith.constant 0.000000e+00 : f32
    %128 = vector.broadcast %cst_30 : f32 to vector<1x9xf32>
    %129 = arith.cmpf oeq, %112, %128 : vector<1x9xf32>
    %130 = vector.broadcast %104 : vector<1x9xf32> to vector<16x9xf32>
    %131 = vector.broadcast %110 : vector<16x1xf32> to vector<16x9xf32>
    %132 = arith.subf %130, %131 : vector<16x9xf32>
    %cst_31 = arith.constant 0.000000e+00 : f32
    %133 = vector.broadcast %cst_31 : f32 to vector<1x9xf32>
    %134 = arith.cmpf oeq, %112, %133 : vector<1x9xf32>
    %cst_32 = arith.constant 1.000000e+00 : f32
    %135 = vector.broadcast %cst_32 : f32 to vector<1x9xf32>
    %136 = arith.select %134, %135, %112 : vector<1x9xi1>, vector<1x9xf32>
    %137 = vector.broadcast %136 : vector<1x9xf32> to vector<16x9xf32>
    %138 = arith.divf %132, %137 : vector<16x9xf32>
    %cst_33 = arith.constant 1.000000e+00 : f32
    %139 = vector.shape_cast %129 : vector<1x9xi1> to vector<1x9xi1>
    %140 = vector.broadcast %139 : vector<1x9xi1> to vector<16x9xi1>
    %141 = vector.broadcast %cst_33 : f32 to vector<16x9xf32>
    %142 = arith.select %140, %141, %138 : vector<16x9xi1>, vector<16x9xf32>
    %143 = arith.minimumf %127, %142 : vector<16x9xf32>
    %cst_34 = arith.constant 0.000000e+00 : f32
    %cst_35 = arith.constant 1.000000e+00 : f32
    %144 = vector.broadcast %cst_34 : f32 to vector<16x9xf32>
    %145 = arith.maximumf %144, %143 : vector<16x9xf32>
    %146 = vector.broadcast %cst_35 : f32 to vector<16x9xf32>
    %147 = arith.minimumf %146, %145 : vector<16x9xf32>
    %c0_36 = arith.constant 0 : index
    %c0_37 = arith.constant 0 : index
    %148 = vector.load %arg4[%c0_36, %c0_37] : memref<14x9xf32, #tpu.memory_space<vmem>>, vector<14x9xf32>
    %149 = vector.extract_strided_slice %53 {offsets = [0, 0], sizes = [16, 1], strides = [1, 1]} : vector<16x14xf32> to vector<16x1xf32>
    %150 = vector.extract_strided_slice %148 {offsets = [0, 0], sizes = [1, 9], strides = [1, 1]} : vector<14x9xf32> to vector<1x9xf32>
    %151 = vector.broadcast %149 : vector<16x1xf32> to vector<16x9xf32>
    %152 = vector.broadcast %150 : vector<1x9xf32> to vector<16x9xf32>
    %153 = arith.mulf %151, %152 : vector<16x9xf32>
    %154 = vector.extract_strided_slice %53 {offsets = [0, 1], sizes = [16, 1], strides = [1, 1]} : vector<16x14xf32> to vector<16x1xf32>
    %155 = vector.extract_strided_slice %148 {offsets = [1, 0], sizes = [1, 9], strides = [1, 1]} : vector<14x9xf32> to vector<1x9xf32>
    %156 = vector.broadcast %154 : vector<16x1xf32> to vector<16x9xf32>
    %157 = vector.broadcast %155 : vector<1x9xf32> to vector<16x9xf32>
    %158 = arith.mulf %156, %157 : vector<16x9xf32>
    %159 = arith.addf %153, %158 : vector<16x9xf32>
    %160 = vector.extract_strided_slice %53 {offsets = [0, 2], sizes = [16, 1], strides = [1, 1]} : vector<16x14xf32> to vector<16x1xf32>
    %161 = vector.extract_strided_slice %148 {offsets = [2, 0], sizes = [1, 9], strides = [1, 1]} : vector<14x9xf32> to vector<1x9xf32>
    %162 = vector.broadcast %160 : vector<16x1xf32> to vector<16x9xf32>
    %163 = vector.broadcast %161 : vector<1x9xf32> to vector<16x9xf32>
    %164 = arith.mulf %162, %163 : vector<16x9xf32>
    %165 = arith.addf %159, %164 : vector<16x9xf32>
    %166 = vector.extract_strided_slice %53 {offsets = [0, 3], sizes = [16, 1], strides = [1, 1]} : vector<16x14xf32> to vector<16x1xf32>
    %167 = vector.extract_strided_slice %148 {offsets = [3, 0], sizes = [1, 9], strides = [1, 1]} : vector<14x9xf32> to vector<1x9xf32>
    %168 = vector.broadcast %166 : vector<16x1xf32> to vector<16x9xf32>
    %169 = vector.broadcast %167 : vector<1x9xf32> to vector<16x9xf32>
    %170 = arith.mulf %168, %169 : vector<16x9xf32>
    %171 = arith.addf %165, %170 : vector<16x9xf32>
    %172 = vector.extract_strided_slice %53 {offsets = [0, 4], sizes = [16, 1], strides = [1, 1]} : vector<16x14xf32> to vector<16x1xf32>
    %173 = vector.extract_strided_slice %148 {offsets = [4, 0], sizes = [1, 9], strides = [1, 1]} : vector<14x9xf32> to vector<1x9xf32>
    %174 = vector.broadcast %172 : vector<16x1xf32> to vector<16x9xf32>
    %175 = vector.broadcast %173 : vector<1x9xf32> to vector<16x9xf32>
    %176 = arith.mulf %174, %175 : vector<16x9xf32>
    %177 = arith.addf %171, %176 : vector<16x9xf32>
    %178 = vector.extract_strided_slice %53 {offsets = [0, 5], sizes = [16, 1], strides = [1, 1]} : vector<16x14xf32> to vector<16x1xf32>
    %179 = vector.extract_strided_slice %148 {offsets = [5, 0], sizes = [1, 9], strides = [1, 1]} : vector<14x9xf32> to vector<1x9xf32>
    %180 = vector.broadcast %178 : vector<16x1xf32> to vector<16x9xf32>
    %181 = vector.broadcast %179 : vector<1x9xf32> to vector<16x9xf32>
    %182 = arith.mulf %180, %181 : vector<16x9xf32>
    %183 = arith.addf %177, %182 : vector<16x9xf32>
    %184 = vector.extract_strided_slice %53 {offsets = [0, 6], sizes = [16, 1], strides = [1, 1]} : vector<16x14xf32> to vector<16x1xf32>
    %185 = vector.extract_strided_slice %148 {offsets = [6, 0], sizes = [1, 9], strides = [1, 1]} : vector<14x9xf32> to vector<1x9xf32>
    %186 = vector.broadcast %184 : vector<16x1xf32> to vector<16x9xf32>
    %187 = vector.broadcast %185 : vector<1x9xf32> to vector<16x9xf32>
    %188 = arith.mulf %186, %187 : vector<16x9xf32>
    %189 = arith.addf %183, %188 : vector<16x9xf32>
    %190 = vector.extract_strided_slice %53 {offsets = [0, 7], sizes = [16, 1], strides = [1, 1]} : vector<16x14xf32> to vector<16x1xf32>
    %191 = vector.extract_strided_slice %148 {offsets = [7, 0], sizes = [1, 9], strides = [1, 1]} : vector<14x9xf32> to vector<1x9xf32>
    %192 = vector.broadcast %190 : vector<16x1xf32> to vector<16x9xf32>
    %193 = vector.broadcast %191 : vector<1x9xf32> to vector<16x9xf32>
    %194 = arith.mulf %192, %193 : vector<16x9xf32>
    %195 = arith.addf %189, %194 : vector<16x9xf32>
    %196 = vector.extract_strided_slice %53 {offsets = [0, 8], sizes = [16, 1], strides = [1, 1]} : vector<16x14xf32> to vector<16x1xf32>
    %197 = vector.extract_strided_slice %148 {offsets = [8, 0], sizes = [1, 9], strides = [1, 1]} : vector<14x9xf32> to vector<1x9xf32>
    %198 = vector.broadcast %196 : vector<16x1xf32> to vector<16x9xf32>
    %199 = vector.broadcast %197 : vector<1x9xf32> to vector<16x9xf32>
    %200 = arith.mulf %198, %199 : vector<16x9xf32>
    %201 = arith.addf %195, %200 : vector<16x9xf32>
    %202 = vector.extract_strided_slice %53 {offsets = [0, 9], sizes = [16, 1], strides = [1, 1]} : vector<16x14xf32> to vector<16x1xf32>
    %203 = vector.extract_strided_slice %148 {offsets = [9, 0], sizes = [1, 9], strides = [1, 1]} : vector<14x9xf32> to vector<1x9xf32>
    %204 = vector.broadcast %202 : vector<16x1xf32> to vector<16x9xf32>
    %205 = vector.broadcast %203 : vector<1x9xf32> to vector<16x9xf32>
    %206 = arith.mulf %204, %205 : vector<16x9xf32>
    %207 = arith.addf %201, %206 : vector<16x9xf32>
    %208 = vector.extract_strided_slice %53 {offsets = [0, 10], sizes = [16, 1], strides = [1, 1]} : vector<16x14xf32> to vector<16x1xf32>
    %209 = vector.extract_strided_slice %148 {offsets = [10, 0], sizes = [1, 9], strides = [1, 1]} : vector<14x9xf32> to vector<1x9xf32>
    %210 = vector.broadcast %208 : vector<16x1xf32> to vector<16x9xf32>
    %211 = vector.broadcast %209 : vector<1x9xf32> to vector<16x9xf32>
    %212 = arith.mulf %210, %211 : vector<16x9xf32>
    %213 = arith.addf %207, %212 : vector<16x9xf32>
    %214 = vector.extract_strided_slice %53 {offsets = [0, 11], sizes = [16, 1], strides = [1, 1]} : vector<16x14xf32> to vector<16x1xf32>
    %215 = vector.extract_strided_slice %148 {offsets = [11, 0], sizes = [1, 9], strides = [1, 1]} : vector<14x9xf32> to vector<1x9xf32>
    %216 = vector.broadcast %214 : vector<16x1xf32> to vector<16x9xf32>
    %217 = vector.broadcast %215 : vector<1x9xf32> to vector<16x9xf32>
    %218 = arith.mulf %216, %217 : vector<16x9xf32>
    %219 = arith.addf %213, %218 : vector<16x9xf32>
    %220 = vector.extract_strided_slice %53 {offsets = [0, 12], sizes = [16, 1], strides = [1, 1]} : vector<16x14xf32> to vector<16x1xf32>
    %221 = vector.extract_strided_slice %148 {offsets = [12, 0], sizes = [1, 9], strides = [1, 1]} : vector<14x9xf32> to vector<1x9xf32>
    %222 = vector.broadcast %220 : vector<16x1xf32> to vector<16x9xf32>
    %223 = vector.broadcast %221 : vector<1x9xf32> to vector<16x9xf32>
    %224 = arith.mulf %222, %223 : vector<16x9xf32>
    %225 = arith.addf %219, %224 : vector<16x9xf32>
    %226 = vector.extract_strided_slice %53 {offsets = [0, 13], sizes = [16, 1], strides = [1, 1]} : vector<16x14xf32> to vector<16x1xf32>
    %227 = vector.extract_strided_slice %148 {offsets = [13, 0], sizes = [1, 9], strides = [1, 1]} : vector<14x9xf32> to vector<1x9xf32>
    %228 = vector.broadcast %226 : vector<16x1xf32> to vector<16x9xf32>
    %229 = vector.broadcast %227 : vector<1x9xf32> to vector<16x9xf32>
    %230 = arith.mulf %228, %229 : vector<16x9xf32>
    %231 = arith.addf %225, %230 : vector<16x9xf32>
    %232 = arith.mulf %100, %231 : vector<16x9xf32>
    %cst_38 = arith.constant dense<0.000000e+00> : vector<16xf32>
    %233 = vector.multi_reduction <add>, %232, %cst_38 [1] : vector<16x9xf32> to vector<16xf32>
    %234 = vector.shape_cast %233 : vector<16xf32> to vector<16x1xf32>
    %235 = arith.mulf %147, %231 : vector<16x9xf32>
    %cst_39 = arith.constant dense<0.000000e+00> : vector<16xf32>
    %236 = vector.multi_reduction <add>, %235, %cst_39 [1] : vector<16x9xf32> to vector<16xf32>
    %237 = vector.shape_cast %236 : vector<16xf32> to vector<16x1xf32>
    %238 = arith.subf %234, %4 : vector<16x1xf32>
    %239 = arith.subf %237, %4 : vector<16x1xf32>
    %240 = arith.subf %5, %6 : vector<16x1xf32>
    %c0_40 = arith.constant 0 : index
    %c0_41 = arith.constant 0 : index
    %241 = vector.load %arg5[%c0_40, %c0_41] : memref<4x512xf32, #tpu.memory_space<vmem>>, vector<4x512xf32>
    %242 = vector.extract_strided_slice %241 {offsets = [0, 0], sizes = [1, 512], strides = [1, 1]} : vector<4x512xf32> to vector<1x512xf32>
    %243 = vector.broadcast %238 : vector<16x1xf32> to vector<16x512xf32>
    %244 = vector.broadcast %242 : vector<1x512xf32> to vector<16x512xf32>
    %245 = arith.mulf %243, %244 : vector<16x512xf32>
    %246 = vector.extract_strided_slice %241 {offsets = [1, 0], sizes = [1, 512], strides = [1, 1]} : vector<4x512xf32> to vector<1x512xf32>
    %247 = vector.broadcast %239 : vector<16x1xf32> to vector<16x512xf32>
    %248 = vector.broadcast %246 : vector<1x512xf32> to vector<16x512xf32>
    %249 = arith.mulf %247, %248 : vector<16x512xf32>
    %250 = arith.addf %245, %249 : vector<16x512xf32>
    %251 = vector.extract_strided_slice %241 {offsets = [2, 0], sizes = [1, 512], strides = [1, 1]} : vector<4x512xf32> to vector<1x512xf32>
    %252 = vector.broadcast %1 : vector<16x1xf32> to vector<16x512xf32>
    %253 = vector.broadcast %251 : vector<1x512xf32> to vector<16x512xf32>
    %254 = arith.mulf %252, %253 : vector<16x512xf32>
    %255 = arith.addf %250, %254 : vector<16x512xf32>
    %256 = vector.extract_strided_slice %241 {offsets = [3, 0], sizes = [1, 512], strides = [1, 1]} : vector<4x512xf32> to vector<1x512xf32>
    %257 = vector.broadcast %240 : vector<16x1xf32> to vector<16x512xf32>
    %258 = vector.broadcast %256 : vector<1x512xf32> to vector<16x512xf32>
    %259 = arith.mulf %257, %258 : vector<16x512xf32>
    %260 = arith.addf %255, %259 : vector<16x512xf32>
    %c0_42 = arith.constant 0 : index
    %c0_43 = arith.constant 0 : index
    %261 = vector.load %arg6[%c0_42, %c0_43] : memref<1x512xf32, #tpu.memory_space<vmem>>, vector<1x512xf32>
    %262 = vector.broadcast %261 : vector<1x512xf32> to vector<16x512xf32>
    %263 = arith.addf %260, %262 : vector<16x512xf32>
    %264 = arith.truncf %263 : vector<16x512xf32> to vector<16x512xbf16>
    %265 = math.tanh %264 : vector<16x512xbf16>
    %c0_44 = arith.constant 0 : index
    %c0_45 = arith.constant 0 : index
    %266 = vector.load %arg7[%c0_44, %c0_45] : memref<512x512xbf16, #tpu.memory_space<vmem>>, vector<512x512xbf16>
    %cst_46 = arith.constant dense<0.000000e+00> : vector<16x512xf32>
    %267 = tpu.matmul %265, %266, %cst_46 {dimension_numbers = #tpu.dot_dimension_numbers<[1], [0], [0], [1], [0, 0, 1, 1], [], []>} : vector<16x512xbf16>, vector<512x512xbf16>, vector<16x512xf32> -> vector<16x512xf32>
    %c0_47 = arith.constant 0 : index
    %c0_48 = arith.constant 0 : index
    %268 = vector.load %arg8[%c0_47, %c0_48] : memref<1x512xf32, #tpu.memory_space<vmem>>, vector<1x512xf32>
    %269 = vector.broadcast %268 : vector<1x512xf32> to vector<16x512xf32>
    %270 = arith.addf %267, %269 : vector<16x512xf32>
    %271 = arith.truncf %270 : vector<16x512xf32> to vector<16x512xbf16>
    %272 = math.tanh %271 : vector<16x512xbf16>
    %c0_49 = arith.constant 0 : index
    %c0_50 = arith.constant 0 : index
    %273 = vector.load %arg9[%c0_49, %c0_50] : memref<512x128xbf16, #tpu.memory_space<vmem>>, vector<512x128xbf16>
    %cst_51 = arith.constant dense<0.000000e+00> : vector<16x128xf32>
    %274 = tpu.matmul %272, %273, %cst_51 {dimension_numbers = #tpu.dot_dimension_numbers<[1], [0], [0], [1], [0, 0, 1, 1], [], []>} : vector<16x512xbf16>, vector<512x128xbf16>, vector<16x128xf32> -> vector<16x128xf32>
    %c0_52 = arith.constant 0 : index
    %c0_53 = arith.constant 0 : index
    %275 = vector.load %arg10[%c0_52, %c0_53] : memref<1x128xf32, #tpu.memory_space<vmem>>, vector<1x128xf32>
    %276 = vector.broadcast %275 : vector<1x128xf32> to vector<16x128xf32>
    %277 = arith.addf %274, %276 : vector<16x128xf32>
    %c0_54 = arith.constant 0 : index
    %c0_55 = arith.constant 0 : index
    %278 = vector.load %arg11[%c0_54, %c0_55] : memref<16x128xf32, #tpu.memory_space<vmem>>, vector<16x128xf32>
    tpu.vector_store %arg11[%c0_54, %c0_55], %277 {strides = array<i32>} : memref<16x128xf32, #tpu.memory_space<vmem>>, vector<16x128xf32>,
    return
  }
  func.func @transform_0(%arg0: i32) -> (i32, i32) {
    %c0_i32 = arith.constant 0 : i32
    %c0_i32_0 = arith.constant 0 : i32
    return %arg0, %c0_i32 : i32, i32
  }
  func.func @transform_1(%arg0: i32) -> (i32, i32) {
    %c0_i32 = arith.constant 0 : i32
    %c0_i32_0 = arith.constant 0 : i32
    %c0_i32_1 = arith.constant 0 : i32
    return %c0_i32, %c0_i32_0 : i32, i32
  }
  func.func @transform_2(%arg0: i32) -> (i32, i32) {
    %c0_i32 = arith.constant 0 : i32
    %c0_i32_0 = arith.constant 0 : i32
    %c0_i32_1 = arith.constant 0 : i32
    return %c0_i32, %c0_i32_0 : i32, i32
  }
  func.func @transform_3(%arg0: i32) -> (i32, i32) {
    %c0_i32 = arith.constant 0 : i32
    %c0_i32_0 = arith.constant 0 : i32
    %c0_i32_1 = arith.constant 0 : i32
    return %c0_i32, %c0_i32_0 : i32, i32
  }
  func.func @transform_4(%arg0: i32) -> (i32, i32) {
    %c0_i32 = arith.constant 0 : i32
    %c0_i32_0 = arith.constant 0 : i32
    %c0_i32_1 = arith.constant 0 : i32
    return %c0_i32, %c0_i32_0 : i32, i32
  }
  func.func @transform_5(%arg0: i32) -> (i32, i32) {
    %c0_i32 = arith.constant 0 : i32
    %c0_i32_0 = arith.constant 0 : i32
    %c0_i32_1 = arith.constant 0 : i32
    return %c0_i32, %c0_i32_0 : i32, i32
  }
  func.func @transform_6(%arg0: i32) -> (i32, i32) {
    %c0_i32 = arith.constant 0 : i32
    %c0_i32_0 = arith.constant 0 : i32
    %c0_i32_1 = arith.constant 0 : i32
    return %c0_i32, %c0_i32_0 : i32, i32
  }
  func.func @transform_7(%arg0: i32) -> (i32, i32) {
    %c0_i32 = arith.constant 0 : i32
    %c0_i32_0 = arith.constant 0 : i32
    %c0_i32_1 = arith.constant 0 : i32
    return %c0_i32, %c0_i32_0 : i32, i32
  }
  func.func @transform_8(%arg0: i32) -> (i32, i32) {
    %c0_i32 = arith.constant 0 : i32
    %c0_i32_0 = arith.constant 0 : i32
    %c0_i32_1 = arith.constant 0 : i32
    return %c0_i32, %c0_i32_0 : i32, i32
  }
  func.func @transform_9(%arg0: i32) -> (i32, i32) {
    %c0_i32 = arith.constant 0 : i32
    %c0_i32_0 = arith.constant 0 : i32
    %c0_i32_1 = arith.constant 0 : i32
    return %c0_i32, %c0_i32_0 : i32, i32
  }
  func.func @transform_10(%arg0: i32) -> (i32, i32) {
    %c0_i32 = arith.constant 0 : i32
    %c0_i32_0 = arith.constant 0 : i32
    return %arg0, %c0_i32 : i32, i32
  }
}

</mosaic_0001>

<llo_original>
// kernel: tpu_custom_call.1
$region0: #{tpu_custom_call.1}
  #allocation0 [shape = 'u32[]', space=smem, size = 0x4, offset = 0x4, fixed_abs, tag = 'smem constant byte address 0x4 - core index']
  #allocation1 [shape = 'u32[144,128]{1,0:T(1,128)}', space=vmem, size = 0x12000, scoped, tag = 'internal scratch']
  %s0 = inlined_call_operand.vmem [shape: f32[64,15], index: 0, kind: input, shape index: {}]
  %s1 = inlined_call_operand.vmem [shape: f32[3,9], index: 1, kind: input, shape index: {}]
  %s2 = inlined_call_operand.vmem [shape: f32[3,14], index: 2, kind: input, shape index: {}]
  %s3 = inlined_call_operand.vmem [shape: f32[14,9], index: 3, kind: input, shape index: {}]
  %s4 = inlined_call_operand.vmem [shape: f32[4,512], index: 4, kind: input, shape index: {}]
  %s5 = inlined_call_operand.vmem [shape: f32[1,512], index: 5, kind: input, shape index: {}]
  %s6 = inlined_call_operand.hbm [shape: bf16[512,512], index: 6, kind: input, shape index: {}]
  %s7 = inlined_call_operand.vmem [shape: f32[1,512], index: 7, kind: input, shape index: {}]
  %s8 = inlined_call_operand.hbm [shape: bf16[512,128], index: 8, kind: input, shape index: {}]
  %s9 = inlined_call_operand.vmem [shape: f32[1,128], index: 9, kind: input, shape index: {}]
  %s10 = inlined_call_operand.hbm [shape: f32[64,128], index: 10, kind: output, shape index: {}]
  %s11 = sld [smem:[#allocation0]]
  $region81: #{tpu_custom_call.1} parent=0
    _
  %s13 = ssub.s32 1, %s11
  %s14 = scalar_select 0, %s13, %s11
  $region1: #{tpu_custom_call.1} parent=0
    #allocation2 [shape = 'u8[524288]{0}', space=vmem, size = 0x80000, scoped, tag = 'input window, operand 6, single buffered']
    #allocation3 [shape = 's32[2]{0}', space=sflag, size = 0x8, scoped, tag = 'scoped memory for tpu_custom_call.1']
    #allocation4 [shape = 's32[2]{0}', space=sflag, size = 0x8, scoped, tag = 'scoped memory for tpu_custom_call.1']
    #allocation5 [shape = 'u8[131072]{0}', space=vmem, size = 0x20000, scoped, tag = 'input window, operand 8, single buffered']
    #allocation6 [shape = 's32[1]{0}', space=sflag, size = 0x4, scoped, tag = 'scoped memory for tpu_custom_call.1']
    #allocation7 [shape = 'u8[16384]{0}', space=vmem, size = 0x4000, scoped, tag = 'output window, operand 0']
    %15 = vsyncpa [#allocation3], 0
    %16 = vsyncpa [#allocation6], 0
    %17 = vsyncpa [#allocation4], 0
    %s18 = scalar_lea.sflag [#allocation4], 1
    %19 = vsyncpa %s18, 0
    loop: start=0, step=1, limit=6
    $region2: #{tpu_custom_call.1} parent=1 // loop_pre_header
      _
    $region3: #{tpu_custom_call.1} parent=1 // loop_header
      %s21 = sphi 0, %s25
      %p22 = scmp.ge.s32.totalorder %s21, 6
      %s31 = sphi 0, %s33
      %s34 = sphi 0, %s31
      %s35 = sphi 0, %s34
      %s51 = sphi 0, %s35
      %s55 = sphi 0, %s55
      %s57 = sphi 0, %s55
      %s58 = sphi 0, %s57
      %s72 = sphi 0, %s58
      %s76 = sphi 0, %s76
      %s78 = sphi 0, %s76
      %s79 = sphi 0, %s78
      %s93 = sphi 0, %s79
      %s97 = sphi 0, %s97
      %s99 = sphi 0, %s97
      %s100 = sphi 0, %s99
      %s114 = sphi 0, %s100
      %s118 = sphi 0, %s118
      %s120 = sphi 0, %s118
      %s121 = sphi 0, %s120
      %s135 = sphi 0, %s121
      %s139 = sphi 0, %s139
      %s141 = sphi 0, %s139
      %s142 = sphi 0, %s141
      %s156 = sphi 0, %s142
      %s160 = sphi 0, %s160
      %s162 = sphi 0, %s160
      %s163 = sphi 0, %s162
      %s177 = sphi 0, %s163
      %s181 = sphi 0, %s181
      %s183 = sphi 0, %s181
      %s184 = sphi 0, %s183
      %s198 = sphi 0, %s184
      %s202 = sphi 0, %s202
      %s204 = sphi 0, %s202
      %s205 = sphi 0, %s204
      %s219 = sphi 0, %s205
      %s223 = sphi 0, %s223
      %s225 = sphi 0, %s223
      %s226 = sphi 0, %s225
      %s240 = sphi 0, %s226
      %s246 = sphi 0, %s248
      %s249 = sphi 0, %s246
      %s250 = sphi 0, %s249
      %s266 = sphi 0, %s250
    $region4: #{tpu_custom_call.1} parent=1 // loop_header_branch
      %24 = sbr.rel (%p22) target = $region8
    $region5: #{tpu_custom_call.1} parent=1 // loop_body
      %s26 = ssub.s32 %s21, 1
      %s27 = ssub.s32 %s21, 2
      %s28 = sadd.s32 %s21, 1
      %s29 = ssub.s32 %s21, %s28
      %p30 = scmp.eq.s32.totalorder %s29, 0
      %s32 = sadd.s32 %s31, 1
      %s33 = scalar_select %p30, %s31, %s32
      %p36 = pneg %p30
      %p37 = scmp.eq.s32.totalorder %s21, 3
      %p38 = por %p36, %p37
      %p39 = scmp.ne.s32.totalorder %s31, %s34
      %p40 = scmp.eq.s32.totalorder %s21, 0
      %p41 = por %p39, %p40
      %p42 = scmp.ne.s32.totalorder %s31, %s34
      %p43 = scmp.eq.s32.totalorder %s26, 3
      %p44 = por %p42, %p43
      %p45 = scmp.ne.s32.totalorder %s34, %s35
      %p46 = scmp.eq.s32.totalorder %s26, 0
      %p47 = por %p45, %p46
      %p48 = scmp.ne.s32.totalorder %s34, %s35
      %p49 = scmp.eq.s32.totalorder %s27, 3
      %p50 = por %p48, %p49
      %p52 = scmp.ne.s32.totalorder %s35, %s51
      %p53 = scmp.eq.s32.totalorder %s27, 0
      %p54 = por %p52, %p53
      %s56 = sadd.s32 %s55, 1
      %p59 = scmp.eq.s32.totalorder %s21, 3
      %p60 = scmp.ne.s32.totalorder %s55, %s57
      %p61 = scmp.eq.s32.totalorder %s21, 0
      %p62 = por %p60, %p61
      %p63 = scmp.ne.s32.totalorder %s55, %s57
      %p64 = scmp.eq.s32.totalorder %s26, 3
      %p65 = por %p63, %p64
      %p66 = scmp.ne.s32.totalorder %s57, %s58
      %p67 = scmp.eq.s32.totalorder %s26, 0
      %p68 = por %p66, %p67
      %p69 = scmp.ne.s32.totalorder %s57, %s58
      %p70 = scmp.eq.s32.totalorder %s27, 3
      %p71 = por %p69, %p70
      %p73 = scmp.ne.s32.totalorder %s58, %s72
      %p74 = scmp.eq.s32.totalorder %s27, 0
      %p75 = por %p73, %p74
      %s77 = sadd.s32 %s76, 1
      %p80 = scmp.eq.s32.totalorder %s21, 3
      %p81 = scmp.ne.s32.totalorder %s76, %s78
      %p82 = scmp.eq.s32.totalorder %s21, 0
      %p83 = por %p81, %p82
      %p84 = scmp.ne.s32.totalorder %s76, %s78
      %p85 = scmp.eq.s32.totalorder %s26, 3
      %p86 = por %p84, %p85
      %p87 = scmp.ne.s32.totalorder %s78, %s79
      %p88 = scmp.eq.s32.totalorder %s26, 0
      %p89 = por %p87, %p88
      %p90 = scmp.ne.s32.totalorder %s78, %s79
      %p91 = scmp.eq.s32.totalorder %s27, 3
      %p92 = por %p90, %p91
      %p94 = scmp.ne.s32.totalorder %s79, %s93
      %p95 = scmp.eq.s32.totalorder %s27, 0
      %p96 = por %p94, %p95
      %s98 = sadd.s32 %s97, 1
      %p101 = scmp.eq.s32.totalorder %s21, 3
      %p102 = scmp.ne.s32.totalorder %s97, %s99
      %p103 = scmp.eq.s32.totalorder %s21, 0
      %p104 = por %p102, %p103
      %p105 = scmp.ne.s32.totalorder %s97, %s99
      %p106 = scmp.eq.s32.totalorder %s26, 3
      %p107 = por %p105, %p106
      %p108 = scmp.ne.s32.totalorder %s99, %s100
      %p109 = scmp.eq.s32.totalorder %s26, 0
      %p110 = por %p108, %p109
      %p111 = scmp.ne.s32.totalorder %s99, %s100
      %p112 = scmp.eq.s32.totalorder %s27, 3
      %p113 = por %p111, %p112
      %p115 = scmp.ne.s32.totalorder %s100, %s114
      %p116 = scmp.eq.s32.totalorder %s27, 0
      %p117 = por %p115, %p116
      %s119 = sadd.s32 %s118, 1
      %p122 = scmp.eq.s32.totalorder %s21, 3
      %p123 = scmp.ne.s32.totalorder %s118, %s120
      %p124 = scmp.eq.s32.totalorder %s21, 0
      %p125 = por %p123, %p124
      %p126 = scmp.ne.s32.totalorder %s118, %s120
      %p127 = scmp.eq.s32.totalorder %s26, 3
      %p128 = por %p126, %p127
      %p129 = scmp.ne.s32.totalorder %s120, %s121
      %p130 = scmp.eq.s32.totalorder %s26, 0
      %p131 = por %p129, %p130
      %p132 = scmp.ne.s32.totalorder %s120, %s121
      %p133 = scmp.eq.s32.totalorder %s27, 3
      %p134 = por %p132, %p133
      %p136 = scmp.ne.s32.totalorder %s121, %s135
      %p137 = scmp.eq.s32.totalorder %s27, 0
      %p138 = por %p136, %p137
      %s140 = sadd.s32 %s139, 1
      %p143 = scmp.eq.s32.totalorder %s21, 3
      %p144 = scmp.ne.s32.totalorder %s139, %s141
      %p145 = scmp.eq.s32.totalorder %s21, 0
      %p146 = por %p144, %p145
      %p147 = scmp.ne.s32.totalorder %s139, %s141
      %p148 = scmp.eq.s32.totalorder %s26, 3
      %p149 = por %p147, %p148
      %p150 = scmp.ne.s32.totalorder %s141, %s142
      %p151 = scmp.eq.s32.totalorder %s26, 0
      %p152 = por %p150, %p151
      %p153 = scmp.ne.s32.totalorder %s141, %s142
      %p154 = scmp.eq.s32.totalorder %s27, 3
      %p155 = por %p153, %p154
      %p157 = scmp.ne.s32.totalorder %s142, %s156
      %p158 = scmp.eq.s32.totalorder %s27, 0
      %p159 = por %p157, %p158
      %s161 = sadd.s32 %s160, 1
      %p164 = scmp.eq.s32.totalorder %s21, 3
      %p165 = scmp.ne.s32.totalorder %s160, %s162
      %p166 = scmp.eq.s32.totalorder %s21, 0
      %p167 = por %p165, %p166
      %p168 = scmp.ne.s32.totalorder %s160, %s162
      %p169 = scmp.eq.s32.totalorder %s26, 3
      %p170 = por %p168, %p169
      %p171 = scmp.ne.s32.totalorder %s162, %s163
      %p172 = scmp.eq.s32.totalorder %s26, 0
      %p173 = por %p171, %p172
      %p174 = scmp.ne.s32.totalorder %s162, %s163
      %p175 = scmp.eq.s32.totalorder %s27, 3
      %p176 = por %p174, %p175
      %p178 = scmp.ne.s32.totalorder %s163, %s177
      %p179 = scmp.eq.s32.totalorder %s27, 0
      %p180 = por %p178, %p179
      %s182 = sadd.s32 %s181, 1
      %p185 = scmp.eq.s32.totalorder %s21, 3
      %p186 = scmp.ne.s32.totalorder %s181, %s183
      %p187 = scmp.eq.s32.totalorder %s21, 0
      %p188 = por %p186, %p187
      %p189 = scmp.ne.s32.totalorder %s181, %s183
      %p190 = scmp.eq.s32.totalorder %s26, 3
      %p191 = por %p189, %p190
      %p192 = scmp.ne.s32.totalorder %s183, %s184
      %p193 = scmp.eq.s32.totalorder %s26, 0
      %p194 = por %p192, %p193
      %p195 = scmp.ne.s32.totalorder %s183, %s184
      %p196 = scmp.eq.s32.totalorder %s27, 3
      %p197 = por %p195, %p196
      %p199 = scmp.ne.s32.totalorder %s184, %s198
      %p200 = scmp.eq.s32.totalorder %s27, 0
      %p201 = por %p199, %p200
      %s203 = sadd.s32 %s202, 1
      %p206 = scmp.eq.s32.totalorder %s21, 3
      %p207 = scmp.ne.s32.totalorder %s202, %s204
      %p208 = scmp.eq.s32.totalorder %s21, 0
      %p209 = por %p207, %p208
      %p210 = scmp.ne.s32.totalorder %s202, %s204
      %p211 = scmp.eq.s32.totalorder %s26, 3
      %p212 = por %p210, %p211
      %p213 = scmp.ne.s32.totalorder %s204, %s205
      %p214 = scmp.eq.s32.totalorder %s26, 0
      %p215 = por %p213, %p214
      %p216 = scmp.ne.s32.totalorder %s204, %s205
      %p217 = scmp.eq.s32.totalorder %s27, 3
      %p218 = por %p216, %p217
      %p220 = scmp.ne.s32.totalorder %s205, %s219
      %p221 = scmp.eq.s32.totalorder %s27, 0
      %p222 = por %p220, %p221
      %s224 = sadd.s32 %s223, 1
      %p227 = scmp.eq.s32.totalorder %s21, 3
      %p228 = scmp.ne.s32.totalorder %s223, %s225
      %p229 = scmp.eq.s32.totalorder %s21, 0
      %p230 = por %p228, %p229
      %p231 = scmp.ne.s32.totalorder %s223, %s225
      %p232 = scmp.eq.s32.totalorder %s26, 3
      %p233 = por %p231, %p232
      %p234 = scmp.ne.s32.totalorder %s225, %s226
      %p235 = scmp.eq.s32.totalorder %s26, 0
      %p236 = por %p234, %p235
      %p237 = scmp.ne.s32.totalorder %s225, %s226
      %p238 = scmp.eq.s32.totalorder %s27, 3
      %p239 = por %p237, %p238
      %p241 = scmp.ne.s32.totalorder %s226, %s240
      %p242 = scmp.eq.s32.totalorder %s27, 0
      %p243 = por %p241, %p242
      %s244 = ssub.s32 %s21, %s28
      %p245 = scmp.eq.s32.totalorder %s244, 0
      %s247 = sadd.s32 %s246, 1
      %s248 = scalar_select %p245, %s246, %s247
      %p251 = pneg %p245
      %p252 = scmp.eq.s32.totalorder %s21, 3
      %p253 = por %p251, %p252
      %p254 = scmp.ne.s32.totalorder %s246, %s249
      %p255 = scmp.eq.s32.totalorder %s21, 0
      %p256 = por %p254, %p255
      %p257 = scmp.ne.s32.totalorder %s246, %s249
      %p258 = scmp.eq.s32.totalorder %s26, 3
      %p259 = por %p257, %p258
      %p260 = scmp.ne.s32.totalorder %s249, %s250
      %p261 = scmp.eq.s32.totalorder %s26, 0
      %p262 = por %p260, %p261
      %p263 = scmp.ne.s32.totalorder %s249, %s250
      %p264 = scmp.eq.s32.totalorder %s27, 3
      %p265 = por %p263, %p264
      %p267 = scmp.ne.s32.totalorder %s250, %s266
      %p268 = scmp.eq.s32.totalorder %s27, 0
      %p269 = por %p267, %p268
      %p270 = scmp.le.s32.totalorder 1, %s21
      %p271 = scmp.lt.s32.totalorder %s21, 5
      %p272 = pnand %p270, %p271
      %p273 = pneg %p272
      // Predicated region
      $region9: #{tpu_custom_call.1} parent=5 // pred_check
        _
      $region10: #{tpu_custom_call.1} parent=5 // pred_check_branch
        %275 = sbr.rel (%p272) target = $region12
      $region11: #{tpu_custom_call.1} parent=5 // pred_region
        %s276 = ssub.s32 %s21, 1
        // Predicated region
        $region13: #{tpu_custom_call.1} parent=11 // pred_check
          %p277 = pneg %p68
        $region14: #{tpu_custom_call.1} parent=11 // pred_check_branch
          %279 = sbr.rel (%p277) target = $region16
        $region15: #{tpu_custom_call.1} parent=11 // pred_region
          _
        $region16: #{tpu_custom_call.1} parent=11 // pred_fallthru
          _
        // Predicated region
        $region17: #{tpu_custom_call.1} parent=11 // pred_check
          %p280 = pneg %p89
        $region18: #{tpu_custom_call.1} parent=11 // pred_check_branch
          %282 = sbr.rel (%p280) target = $region20
        $region19: #{tpu_custom_call.1} parent=11 // pred_region
          _
        $region20: #{tpu_custom_call.1} parent=11 // pred_fallthru
          _
        // Predicated region
        $region21: #{tpu_custom_call.1} parent=11 // pred_check
          %p283 = pneg %p110
        $region22: #{tpu_custom_call.1} parent=11 // pred_check_branch
          %285 = sbr.rel (%p283) target = $region24
        $region23: #{tpu_custom_call.1} parent=11 // pred_region
          _
        $region24: #{tpu_custom_call.1} parent=11 // pred_fallthru
          _
        // Predicated region
        $region25: #{tpu_custom_call.1} parent=11 // pred_check
          %p286 = pneg %p131
        $region26: #{tpu_custom_call.1} parent=11 // pred_check_branch
          %288 = sbr.rel (%p286) target = $region28
        $region27: #{tpu_custom_call.1} parent=11 // pred_region
          _
        $region28: #{tpu_custom_call.1} parent=11 // pred_fallthru
          _
        // Predicated region
        $region29: #{tpu_custom_call.1} parent=11 // pred_check
          %p289 = pneg %p152
        $region30: #{tpu_custom_call.1} parent=11 // pred_check_branch
          %291 = sbr.rel (%p289) target = $region32
        $region31: #{tpu_custom_call.1} parent=11 // pred_region
          _
        $region32: #{tpu_custom_call.1} parent=11 // pred_fallthru
          _
        // Predicated region
        $region33: #{tpu_custom_call.1} parent=11 // pred_check
          %p292 = pneg %p173
        $region34: #{tpu_custom_call.1} parent=11 // pred_check_branch
          %294 = sbr.rel (%p292) target = $region36
        $region35: #{tpu_custom_call.1} parent=11 // pred_region
          %s296 = ssub.s32 16384, 16384
          %297 = vsyncadd [#allocation3], %s296
          %s298 = sshll.u32 [#allocation2], 4
          %s299 = int_to_ptr.vmem [resolvable:$true] %s298
          %304 = dma.hbm_to_vmem [thread:$0]  %s6, 16384, %s299, [#allocation3], 256, 256, 16
        $region36: #{tpu_custom_call.1} parent=11 // pred_fallthru
          _
        // Predicated region
        $region37: #{tpu_custom_call.1} parent=11 // pred_check
          %p305 = pneg %p194
        $region38: #{tpu_custom_call.1} parent=11 // pred_check_branch
          %307 = sbr.rel (%p305) target = $region40
        $region39: #{tpu_custom_call.1} parent=11 // pred_region
          _
        $region40: #{tpu_custom_call.1} parent=11 // pred_fallthru
          _
        // Predicated region
        $region41: #{tpu_custom_call.1} parent=11 // pred_check
          %p308 = pneg %p215
        $region42: #{tpu_custom_call.1} parent=11 // pred_check_branch
          %310 = sbr.rel (%p308) target = $region44
        $region43: #{tpu_custom_call.1} parent=11 // pred_region
          %s312 = ssub.s32 4096, 4096
          %313 = vsyncadd [#allocation6], %s312
          %s314 = sshll.u32 [#allocation5], 4
          %s315 = int_to_ptr.vmem [resolvable:$true] %s314
          %320 = dma.hbm_to_vmem [thread:$0]  %s8, 4096, %s315, [#allocation6], 64, 64, 4
        $region44: #{tpu_custom_call.1} parent=11 // pred_fallthru
          _
        // Predicated region
        $region45: #{tpu_custom_call.1} parent=11 // pred_check
          %p321 = pneg %p236
        $region46: #{tpu_custom_call.1} parent=11 // pred_check_branch
          %323 = sbr.rel (%p321) target = $region48
        $region47: #{tpu_custom_call.1} parent=11 // pred_region
          _
        $region48: #{tpu_custom_call.1} parent=11 // pred_fallthru
          _
      $region12: #{tpu_custom_call.1} parent=5 // pred_fallthru
        _
      %p324 = scmp.lt.s32.totalorder %s21, 4
      // Predicated region
      $region49: #{tpu_custom_call.1} parent=5 // pred_check
        %p325 = pneg %p324
      $region50: #{tpu_custom_call.1} parent=5 // pred_check_branch
        %327 = sbr.rel (%p325) target = $region52
      $region51: #{tpu_custom_call.1} parent=5 // pred_region
        // Predicated region
        $region53: #{tpu_custom_call.1} parent=51 // pred_check
          %p328 = pneg %p41
        $region54: #{tpu_custom_call.1} parent=51 // pred_check_branch
          %330 = sbr.rel (%p328) target = $region56
        $region55: #{tpu_custom_call.1} parent=51 // pred_region
          %s331 = smul.u32 2, %s21
          %p332 = scmp.lt.s32.totalorder %s331, 7
          %s333 = scalar_select %p332, %s331, 7
          %s334 = smul.addr %s333, 8
          %s335 = scalar_lea.vmem %s0, %s334
          %s336 = smul.u32 2, %s21
        $region56: #{tpu_custom_call.1} parent=51 // pred_fallthru
          _
      $region52: #{tpu_custom_call.1} parent=5 // pred_fallthru
        _
      %p337 = scmp.le.s32.totalorder 1, %s21
      %p338 = scmp.lt.s32.totalorder %s21, 5
      %p339 = pnand %p337, %p338
      %p340 = pneg %p339
      // Predicated region
      $region57: #{tpu_custom_call.1} parent=5 // pred_check
        _
      $region58: #{tpu_custom_call.1} parent=5 // pred_check_branch
        %342 = sbr.rel (%p339) target = $region60
      $region59: #{tpu_custom_call.1} parent=5 // pred_region
        %s343 = ssub.s32 %s21, 1
        // Predicated region
        $region61: #{tpu_custom_call.1} parent=59 // pred_check
          %p344 = pneg %p173
        $region62: #{tpu_custom_call.1} parent=59 // pred_check_branch
          %346 = sbr.rel (%p344) target = $region64
        $region63: #{tpu_custom_call.1} parent=59 // pred_region
          %347 = dma.done [#allocation3], 16384
        $region64: #{tpu_custom_call.1} parent=59 // pred_fallthru
          _
        // Predicated region
        $region65: #{tpu_custom_call.1} parent=59 // pred_check
          %p348 = pneg %p215
        $region66: #{tpu_custom_call.1} parent=59 // pred_check_branch
          %350 = sbr.rel (%p348) target = $region68
        $region67: #{tpu_custom_call.1} parent=59 // pred_region
          %351 = dma.done [#allocation6], 4096
        $region68: #{tpu_custom_call.1} parent=59 // pred_fallthru
          _
        %s352 = smul.u32 2, %s26
        %p353 = scmp.lt.s32.totalorder %s352, 7
        %s354 = scalar_select %p353, %s352, 7
        %s355 = smul.addr %s354, 8
        %s356 = scalar_lea.vmem %s0, %s355
        %p357 = pneg %p47
        %p358 = pneg %p44
        %p359 = pneg %p68
        %p360 = pneg %p65
        %p361 = pneg %p89
        %p362 = pneg %p86
        %p363 = pneg %p110
        %p364 = pneg %p107
        %p365 = pneg %p131
        %p366 = pneg %p128
        %p367 = pneg %p152
        %p368 = pneg %p149
        %p369 = pneg %p173
        %p370 = pneg %p170
        %p371 = pneg %p194
        %p372 = pneg %p191
        %p373 = pneg %p215
        %p374 = pneg %p212
        %p375 = pneg %p236
        %p376 = pneg %p233
        %p377 = pneg %p262
        %p378 = pneg %p259
        %s379 = sand.u32 %s249, 1
        %s380 = scalar_lea.sflag [#allocation4], %s379
        %s381 = sand.u32 %s249, 1
        %s382 = smul.addr %s381, 16
        %s383 = scalar_lea.vmem [#allocation7], %s382
        %s384 = smul.u32 2, %s26
        %p385 = scmp.lt.s32.totalorder %s384, 7
        %s386 = scalar_select %p385, %s384, 7
        %s387 = smul.addr %s386, 8
        %s388 = scalar_lea.vmem %s0, %s387
        %s389 = smul.u32 2, %s26
        %s390 = smul.u32 2, %s26
        %v392 = vld [vmem:[%s388] sm:$0xff]
        %v393 = vld [vmem:[%s388 + $0x8] sm:$0xff]
        %v394 = vld [vmem:[%s2] sm:$0x7]
        %v395 = vlaneseq
        %v396 = vshrl.u32 %v395, 7
        %v397 = vsub.s32 0, %v396
        %v398 = vrot.slane %v394, %v397
        %401 = vrot.lane.b32.xlu0 %v392, 127
        %v402 = vpop.permute.xlu0 %401
        %403 = vrot.lane.b32.xlu0 %v393, 127
        %v404 = vpop.permute.xlu0 %403
        %v407 = vmax.f32 %v398, %v402
        %v408 = vmax.f32 %v398, %v404
        %411 = vrot.lane.b32.xlu0 %v407, 13
        %v412 = vpop.permute.xlu0 %411
        %413 = vrot.lane.b32.xlu0 %v408, 13
        %v414 = vpop.permute.xlu0 %413
        %v417 = vmin.f32 %v398, %v412
        %v418 = vmin.f32 %v398, %v414
        %v420 = vrot.slane %v394, 1
        %v422 = vsub.f32 %v394, %v420
        %v423 = vrot.slane %v394, 6
        %v425 = vsub.f32 %v394, %v423
        %vm426 = vcmp.eq.f32.partialorder %v422, 0.0
        %428 = vset.pattern.permute.xlu0 13
        %429 = vperm.xlu0 %428, %v417
        %v430 = vpop.permute.xlu0 %429
        %433 = vset.pattern.permute.xlu0 13
        %434 = vperm.xlu0 %433, %v418
        %v435 = vpop.permute.xlu0 %434
        %v437 = vlaneseq
        %v438 = vshrl.u32 %v437, 7
        %v439 = vsub.s32 1, %v438
        %v440 = vrot.slane %v394, %v439
        %v441 = vsub.f32 %v430, %v440
        %v442 = vsub.f32 %v435, %v440
        %v443 = vsel %vm426, 1.0, %v422
        %v444 = vlaneseq
        %v445 = vshrl.u32 %v444, 7
        %v446 = vsub.s32 0, %v445
        %v447 = vrot.slane %v443, %v446
        %v448 = vrcp.pop %v447
        %v449 = vmul.f32 %v441, %v448
        %v450 = vmul.f32 %v442, %v448
        %v451 = vsel %vm426, 1, 0
        %v452 = vlaneseq
        %v453 = vshrl.u32 %v452, 7
        %v454 = vsub.s32 0, %v453
        %v455 = vrot.slane %v451, %v454
        %vm456 = vcmp.eq.s32.totalorder %v455, 1
        %v457 = vsel %vm456, 1.0, %v449
        %v458 = vsel %vm456, 1.0, %v450
        %vm459 = vcmp.eq.f32.partialorder %v425, 0.0
        %v460 = vlaneseq
        %v461 = vshrl.u32 %v460, 7
        %v462 = vsub.s32 2, %v461
        %v463 = vrot.slane %v394, %v462
        %v464 = vsub.f32 %v463, %v430
        %v465 = vsub.f32 %v463, %v435
        %v466 = vsel %vm459, 1.0, %v425
        %v467 = vlaneseq
        %v468 = vshrl.u32 %v467, 7
        %v469 = vsub.s32 2, %v468
        %v470 = vrot.slane %v466, %v469
        %v471 = vrcp.pop %v470
        %v472 = vmul.f32 %v464, %v471
        %v473 = vmul.f32 %v465, %v471
        %v474 = vsel %vm459, 1, 0
        %v475 = vlaneseq
        %v476 = vshrl.u32 %v475, 7
        %v477 = vsub.s32 2, %v476
        %v478 = vrot.slane %v474, %v477
        %vm479 = vcmp.eq.s32.totalorder %v478, 1
        %v480 = vsel %vm479, 1.0, %v472
        %v481 = vsel %vm479, 1.0, %v473
        %v482 = vmin.f32 %v457, %v480
        %v483 = vmin.f32 %v458, %v481
        %v484 = vmax.f32 %v482, 0.0
        %v485 = vmax.f32 %v483, 0.0
        %v486 = vmin.f32 %v484, 1.0
        %v487 = vmin.f32 %v485, 1.0
        %v488 = vld [vmem:[%s1] sm:$0x7]
        %v489 = vlaneseq
        %v490 = vshrl.u32 %v489, 7
        %v491 = vsub.s32 0, %v490
        %v492 = vrot.slane %v488, %v491
        %493 = vrot.lane.b32.xlu0 %v392, 126
        %v494 = vpop.permute.xlu0 %493
        %495 = vrot.lane.b32.xlu0 %v393, 126
        %v496 = vpop.permute.xlu0 %495
        %v499 = vmax.f32 %v492, %v494
        %v500 = vmax.f32 %v492, %v496
        %503 = vrot.lane.b32.xlu0 %v499, 8
        %v504 = vpop.permute.xlu0 %503
        %505 = vrot.lane.b32.xlu0 %v500, 8
        %v506 = vpop.permute.xlu0 %505
        %v509 = vmin.f32 %v492, %v504
        %v510 = vmin.f32 %v492, %v506
        %v512 = vrot.slane %v488, 1
        %v514 = vsub.f32 %v488, %v512
        %v515 = vrot.slane %v488, 6
        %v517 = vsub.f32 %v488, %v515
        %vm518 = vcmp.eq.f32.partialorder %v514, 0.0
        %520 = vset.pattern.permute.xlu0 8
        %521 = vperm.xlu0 %520, %v509
        %v522 = vpop.permute.xlu0 %521
        %525 = vset.pattern.permute.xlu0 8
        %526 = vperm.xlu0 %525, %v510
        %v527 = vpop.permute.xlu0 %526
        %v529 = vlaneseq
        %v530 = vshrl.u32 %v529, 7
        %v531 = vsub.s32 1, %v530
        %v532 = vrot.slane %v488, %v531
        %v533 = vsub.f32 %v522, %v532
        %v534 = vsub.f32 %v527, %v532
        %v535 = vsel %vm518, 1.0, %v514
        %v536 = vlaneseq
        %v537 = vshrl.u32 %v536, 7
        %v538 = vsub.s32 0, %v537
        %v539 = vrot.slane %v535, %v538
        %v540 = vrcp.pop %v539
        %v541 = vmul.f32 %v533, %v540
        %v542 = vmul.f32 %v534, %v540
        %v543 = vsel %vm518, 1, 0
        %v544 = vlaneseq
        %v545 = vshrl.u32 %v544, 7
        %v546 = vsub.s32 0, %v545
        %v547 = vrot.slane %v543, %v546
        %vm548 = vcmp.eq.s32.totalorder %v547, 1
        %v549 = vsel %vm548, 1.0, %v541
        %v550 = vsel %vm548, 1.0, %v542
        %vm551 = vcmp.eq.f32.partialorder %v517, 0.0
        %v552 = vlaneseq
        %v553 = vshrl.u32 %v552, 7
        %v554 = vsub.s32 2, %v553
        %v555 = vrot.slane %v488, %v554
        %v556 = vsub.f32 %v555, %v522
        %v557 = vsub.f32 %v555, %v527
        %v558 = vsel %vm551, 1.0, %v517
        %v559 = vlaneseq
        %v560 = vshrl.u32 %v559, 7
        %v561 = vsub.s32 2, %v560
        %v562 = vrot.slane %v558, %v561
        %v563 = vrcp.pop %v562
        %v564 = vmul.f32 %v556, %v563
        %v565 = vmul.f32 %v557, %v563
        %v566 = vsel %vm551, 1, 0
        %v567 = vlaneseq
        %v568 = vshrl.u32 %v567, 7
        %v569 = vsub.s32 2, %v568
        %v570 = vrot.slane %v566, %v569
        %vm571 = vcmp.eq.s32.totalorder %v570, 1
        %v572 = vsel %vm571, 1.0, %v564
        %v573 = vsel %vm571, 1.0, %v565
        %v574 = vmin.f32 %v549, %v572
        %v575 = vmin.f32 %v550, %v573
        %v576 = vmax.f32 %v574, 0.0
        %v577 = vmax.f32 %v575, 0.0
        %v578 = vmin.f32 %v576, 1.0
        %v579 = vmin.f32 %v577, 1.0
        %580 = vrot.lane.b32.xlu0 %v392, 125
        %v581 = vpop.permute.xlu0 %580
        %582 = vrot.lane.b32.xlu0 %v393, 125
        %v583 = vpop.permute.xlu0 %582
        %v586 = vmax.f32 %v492, %v581
        %v587 = vmax.f32 %v492, %v583
        %590 = vrot.lane.b32.xlu0 %v586, 8
        %v591 = vpop.permute.xlu0 %590
        %592 = vrot.lane.b32.xlu0 %v587, 8
        %v593 = vpop.permute.xlu0 %592
        %v596 = vmin.f32 %v492, %v591
        %v597 = vmin.f32 %v492, %v593
        %599 = vset.pattern.permute.xlu0 8
        %600 = vperm.xlu0 %599, %v596
        %v601 = vpop.permute.xlu0 %600
        %604 = vset.pattern.permute.xlu0 8
        %605 = vperm.xlu0 %604, %v597
        %v606 = vpop.permute.xlu0 %605
        %v608 = vsub.f32 %v601, %v532
        %v609 = vsub.f32 %v606, %v532
        %v610 = vmul.f32 %v608, %v540
        %v611 = vmul.f32 %v609, %v540
        %v612 = vsel %vm548, 1.0, %v610
        %v613 = vsel %vm548, 1.0, %v611
        %v614 = vsub.f32 %v555, %v601
        %v615 = vsub.f32 %v555, %v606
        %v616 = vmul.f32 %v614, %v563
        %v617 = vmul.f32 %v615, %v563
        %v618 = vsel %vm571, 1.0, %v616
        %v619 = vsel %vm571, 1.0, %v617
        %v620 = vmin.f32 %v612, %v618
        %v621 = vmin.f32 %v613, %v619
        %v622 = vmax.f32 %v620, 0.0
        %v623 = vmax.f32 %v621, 0.0
        %v624 = vmin.f32 %v622, 1.0
        %v625 = vmin.f32 %v623, 1.0
        %v626 = vld [vmem:[%s3] sm:$0xff]
        %v627 = vld [vmem:[%s3 + $0x8] sm:$0x3f]
        %629 = vset.pattern.permute.xlu0 0
        %630 = vperm.xlu0 %629, %v486
        %v631 = vpop.permute.xlu0 %630
        %634 = vset.pattern.permute.xlu0 0
        %635 = vperm.xlu0 %634, %v487
        %v636 = vpop.permute.xlu0 %635
        %v638 = vlaneseq
        %v639 = vshrl.u32 %v638, 7
        %v640 = vsub.s32 0, %v639
        %v641 = vrot.slane %v626, %v640
        %v642 = vmul.f32 %v631, %v641
        %v643 = vmul.f32 %v636, %v641
        %644 = vset.pattern.permute.xlu0 1
        %645 = vperm.xlu0 %644, %v486
        %v646 = vpop.permute.xlu0 %645
        %648 = vset.pattern.permute.xlu0 1
        %649 = vperm.xlu0 %648, %v487
        %v650 = vpop.permute.xlu0 %649
        %v652 = vlaneseq
        %v653 = vshrl.u32 %v652, 7
        %v654 = vsub.s32 1, %v653
        %v655 = vrot.slane %v626, %v654
        %v656 = vmul.f32 %v646, %v655
        %v657 = vmul.f32 %v650, %v655
        %v658 = vadd.f32 %v642, %v656
        %v659 = vadd.f32 %v643, %v657
        %660 = vset.pattern.permute.xlu0 2
        %661 = vperm.xlu0 %660, %v486
        %v662 = vpop.permute.xlu0 %661
        %664 = vset.pattern.permute.xlu0 2
        %665 = vperm.xlu0 %664, %v487
        %v666 = vpop.permute.xlu0 %665
        %v668 = vlaneseq
        %v669 = vshrl.u32 %v668, 7
        %v670 = vsub.s32 2, %v669
        %v671 = vrot.slane %v626, %v670
        %v672 = vmul.f32 %v662, %v671
        %v673 = vmul.f32 %v666, %v671
        %v674 = vadd.f32 %v658, %v672
        %v675 = vadd.f32 %v659, %v673
        %676 = vset.pattern.permute.xlu0 3
        %677 = vperm.xlu0 %676, %v486
        %v678 = vpop.permute.xlu0 %677
        %680 = vset.pattern.permute.xlu0 3
        %681 = vperm.xlu0 %680, %v487
        %v682 = vpop.permute.xlu0 %681
        %v684 = vlaneseq
        %v685 = vshrl.u32 %v684, 7
        %v686 = vsub.s32 3, %v685
        %v687 = vrot.slane %v626, %v686
        %v688 = vmul.f32 %v678, %v687
        %v689 = vmul.f32 %v682, %v687
        %v690 = vadd.f32 %v674, %v688
        %v691 = vadd.f32 %v675, %v689
        %692 = vset.pattern.permute.xlu0 4
        %693 = vperm.xlu0 %692, %v486
        %v694 = vpop.permute.xlu0 %693
        %696 = vset.pattern.permute.xlu0 4
        %697 = vperm.xlu0 %696, %v487
        %v698 = vpop.permute.xlu0 %697
        %v700 = vlaneseq
        %v701 = vshrl.u32 %v700, 7
        %v702 = vsub.s32 4, %v701
        %v703 = vrot.slane %v626, %v702
        %v704 = vmul.f32 %v694, %v703
        %v705 = vmul.f32 %v698, %v703
        %v706 = vadd.f32 %v690, %v704
        %v707 = vadd.f32 %v691, %v705
        %708 = vset.pattern.permute.xlu0 5
        %709 = vperm.xlu0 %708, %v486
        %v710 = vpop.permute.xlu0 %709
        %712 = vset.pattern.permute.xlu0 5
        %713 = vperm.xlu0 %712, %v487
        %v714 = vpop.permute.xlu0 %713
        %v716 = vlaneseq
        %v717 = vshrl.u32 %v716, 7
        %v718 = vsub.s32 5, %v717
        %v719 = vrot.slane %v626, %v718
        %v720 = vmul.f32 %v710, %v719
        %v721 = vmul.f32 %v714, %v719
        %v722 = vadd.f32 %v706, %v720
        %v723 = vadd.f32 %v707, %v721
        %724 = vset.pattern.permute.xlu0 6
        %725 = vperm.xlu0 %724, %v486
        %v726 = vpop.permute.xlu0 %725
        %728 = vset.pattern.permute.xlu0 6
        %729 = vperm.xlu0 %728, %v487
        %v730 = vpop.permute.xlu0 %729
        %v732 = vlaneseq
        %v733 = vshrl.u32 %v732, 7
        %v734 = vsub.s32 6, %v733
        %v735 = vrot.slane %v626, %v734
        %v736 = vmul.f32 %v726, %v735
        %v737 = vmul.f32 %v730, %v735
        %v738 = vadd.f32 %v722, %v736
        %v739 = vadd.f32 %v723, %v737
        %740 = vset.pattern.permute.xlu0 7
        %741 = vperm.xlu0 %740, %v486
        %v742 = vpop.permute.xlu0 %741
        %744 = vset.pattern.permute.xlu0 7
        %745 = vperm.xlu0 %744, %v487
        %v746 = vpop.permute.xlu0 %745
        %v748 = vlaneseq
        %v749 = vshrl.u32 %v748, 7
        %v750 = vsub.s32 7, %v749
        %v751 = vrot.slane %v626, %v750
        %v752 = vmul.f32 %v742, %v751
        %v753 = vmul.f32 %v746, %v751
        %v754 = vadd.f32 %v738, %v752
        %v755 = vadd.f32 %v739, %v753
        %756 = vset.pattern.permute.xlu0 8
        %757 = vperm.xlu0 %756, %v486
        %v758 = vpop.permute.xlu0 %757
        %760 = vset.pattern.permute.xlu0 8
        %761 = vperm.xlu0 %760, %v487
        %v762 = vpop.permute.xlu0 %761
        %v764 = vlaneseq
        %v765 = vshrl.u32 %v764, 7
        %v766 = vsub.s32 0, %v765
        %v767 = vrot.slane %v627, %v766
        %v768 = vmul.f32 %v758, %v767
        %v769 = vmul.f32 %v762, %v767
        %v770 = vadd.f32 %v754, %v768
        %v771 = vadd.f32 %v755, %v769
        %772 = vset.pattern.permute.xlu0 9
        %773 = vperm.xlu0 %772, %v486
        %v774 = vpop.permute.xlu0 %773
        %776 = vset.pattern.permute.xlu0 9
        %777 = vperm.xlu0 %776, %v487
        %v778 = vpop.permute.xlu0 %777
        %v780 = vlaneseq
        %v781 = vshrl.u32 %v780, 7
        %v782 = vsub.s32 1, %v781
        %v783 = vrot.slane %v627, %v782
        %v784 = vmul.f32 %v774, %v783
        %v785 = vmul.f32 %v778, %v783
        %v786 = vadd.f32 %v770, %v784
        %v787 = vadd.f32 %v771, %v785
        %788 = vset.pattern.permute.xlu0 10
        %789 = vperm.xlu0 %788, %v486
        %v790 = vpop.permute.xlu0 %789
        %792 = vset.pattern.permute.xlu0 10
        %793 = vperm.xlu0 %792, %v487
        %v794 = vpop.permute.xlu0 %793
        %v796 = vlaneseq
        %v797 = vshrl.u32 %v796, 7
        %v798 = vsub.s32 2, %v797
        %v799 = vrot.slane %v627, %v798
        %v800 = vmul.f32 %v790, %v799
        %v801 = vmul.f32 %v794, %v799
        %v802 = vadd.f32 %v786, %v800
        %v803 = vadd.f32 %v787, %v801
        %804 = vset.pattern.permute.xlu0 11
        %805 = vperm.xlu0 %804, %v486
        %v806 = vpop.permute.xlu0 %805
        %808 = vset.pattern.permute.xlu0 11
        %809 = vperm.xlu0 %808, %v487
        %v810 = vpop.permute.xlu0 %809
        %v812 = vlaneseq
        %v813 = vshrl.u32 %v812, 7
        %v814 = vsub.s32 3, %v813
        %v815 = vrot.slane %v627, %v814
        %v816 = vmul.f32 %v806, %v815
        %v817 = vmul.f32 %v810, %v815
        %v818 = vadd.f32 %v802, %v816
        %v819 = vadd.f32 %v803, %v817
        %820 = vset.pattern.permute.xlu0 12
        %821 = vperm.xlu0 %820, %v486
        %v822 = vpop.permute.xlu0 %821
        %824 = vset.pattern.permute.xlu0 12
        %825 = vperm.xlu0 %824, %v487
        %v826 = vpop.permute.xlu0 %825
        %v828 = vlaneseq
        %v829 = vshrl.u32 %v828, 7
        %v830 = vsub.s32 4, %v829
        %v831 = vrot.slane %v627, %v830
        %v832 = vmul.f32 %v822, %v831
        %v833 = vmul.f32 %v826, %v831
        %v834 = vadd.f32 %v818, %v832
        %v835 = vadd.f32 %v819, %v833
        %836 = vset.pattern.permute.xlu0 13
        %837 = vperm.xlu0 %836, %v486
        %v838 = vpop.permute.xlu0 %837
        %840 = vset.pattern.permute.xlu0 13
        %841 = vperm.xlu0 %840, %v487
        %v842 = vpop.permute.xlu0 %841
        %v844 = vlaneseq
        %v845 = vshrl.u32 %v844, 7
        %v846 = vsub.s32 5, %v845
        %v847 = vrot.slane %v627, %v846
        %v848 = vmul.f32 %v838, %v847
        %v849 = vmul.f32 %v842, %v847
        %v850 = vadd.f32 %v834, %v848
        %v851 = vadd.f32 %v835, %v849
        %v852 = vmul.f32 %v578, %v850
        %v853 = vmul.f32 %v579, %v851
        %vm854 = vcmask 72704
        %v855 = vsel %vm854, %v852, 0.0
        %856 = vadd.xlane.f32.xlu0 %v855
        %v857 = vpop.xlane.xlu0 %856
        %v858 = vsel %vm854, %v853, 0.0
        %859 = vadd.xlane.f32.xlu0 %v858
        %v860 = vpop.xlane.xlu0 %859
        %v861 = vmul.f32 %v624, %v850
        %v862 = vmul.f32 %v625, %v851
        %v863 = vsel %vm854, %v861, 0.0
        %864 = vadd.xlane.f32.xlu0 %v863
        %v865 = vpop.xlane.xlu0 %864
        %v866 = vsel %vm854, %v862, 0.0
        %867 = vadd.xlane.f32.xlu0 %v866
        %v868 = vpop.xlane.xlu0 %867
        %v869 = vsub.f32 %v857, %v392
        %v870 = vsub.f32 %v860, %v393
        %v871 = vsub.f32 %v865, %v392
        %v872 = vsub.f32 %v868, %v393
        %v873 = vsub.f32 %v392, %v402
        %v874 = vsub.f32 %v393, %v404
        %v875 = vld [vmem:[%s4] sm:$0xff]
        %v876 = vld [vmem:[%s4 + $0x8] sm:$0xff]
        %878 = vset.pattern.permute.xlu0 8
        %879 = vperm.xlu0 %878, %v869
        %v880 = vpop.permute.xlu0 %879
        %883 = vset.pattern.permute.xlu0 8
        %884 = vperm.xlu0 %883, %v870
        %v885 = vpop.permute.xlu0 %884
        %v889 = vlaneseq
        %v890 = vshrl.u32 %v889, 7
        %v891 = vsub.s32 0, %v890
        %v892 = vrot.slane %v875, %v891
        %v893 = vlaneseq
        %v894 = vshrl.u32 %v893, 7
        %v895 = vsub.s32 4, %v894
        %v896 = vrot.slane %v875, %v895
        %v897 = vlaneseq
        %v898 = vshrl.u32 %v897, 7
        %v899 = vsub.s32 0, %v898
        %v900 = vrot.slane %v876, %v899
        %v901 = vlaneseq
        %v902 = vshrl.u32 %v901, 7
        %v903 = vsub.s32 4, %v902
        %v904 = vrot.slane %v876, %v903
        %v909 = vlaneseq
        %v910 = vshrl.u32 %v909, 7
        %v911 = vsub.s32 0, %v910
        %v912 = vrot.slane %v892, %v911
        %v913 = vlaneseq
        %v914 = vshrl.u32 %v913, 7
        %v915 = vsub.s32 0, %v914
        %v916 = vrot.slane %v896, %v915
        %v917 = vlaneseq
        %v918 = vshrl.u32 %v917, 7
        %v919 = vsub.s32 0, %v918
        %v920 = vrot.slane %v900, %v919
        %v921 = vlaneseq
        %v922 = vshrl.u32 %v921, 7
        %v923 = vsub.s32 0, %v922
        %v924 = vrot.slane %v904, %v923
        %v925 = vmul.f32 %v880, %v912
        %v926 = vmul.f32 %v880, %v916
        %v927 = vmul.f32 %v880, %v920
        %v928 = vmul.f32 %v880, %v924
        %v929 = vmul.f32 %v885, %v912
        %v930 = vmul.f32 %v885, %v916
        %v931 = vmul.f32 %v885, %v920
        %v932 = vmul.f32 %v885, %v924
        %934 = vset.pattern.permute.xlu0 8
        %935 = vperm.xlu0 %934, %v871
        %v936 = vpop.permute.xlu0 %935
        %939 = vset.pattern.permute.xlu0 8
        %940 = vperm.xlu0 %939, %v872
        %v941 = vpop.permute.xlu0 %940
        %v943 = vlaneseq
        %v944 = vshrl.u32 %v943, 7
        %v945 = vsub.s32 1, %v944
        %v946 = vrot.slane %v875, %v945
        %v947 = vlaneseq
        %v948 = vshrl.u32 %v947, 7
        %v949 = vsub.s32 5, %v948
        %v950 = vrot.slane %v875, %v949
        %v951 = vlaneseq
        %v952 = vshrl.u32 %v951, 7
        %v953 = vsub.s32 1, %v952
        %v954 = vrot.slane %v876, %v953
        %v955 = vlaneseq
        %v956 = vshrl.u32 %v955, 7
        %v957 = vsub.s32 5, %v956
        %v958 = vrot.slane %v876, %v957
        %v963 = vlaneseq
        %v964 = vshrl.u32 %v963, 7
        %v965 = vsub.s32 1, %v964
        %v966 = vrot.slane %v946, %v965
        %v967 = vlaneseq
        %v968 = vshrl.u32 %v967, 7
        %v969 = vsub.s32 1, %v968
        %v970 = vrot.slane %v950, %v969
        %v971 = vlaneseq
        %v972 = vshrl.u32 %v971, 7
        %v973 = vsub.s32 1, %v972
        %v974 = vrot.slane %v954, %v973
        %v975 = vlaneseq
        %v976 = vshrl.u32 %v975, 7
        %v977 = vsub.s32 1, %v976
        %v978 = vrot.slane %v958, %v977
        %v979 = vmul.f32 %v936, %v966
        %v980 = vmul.f32 %v936, %v970
        %v981 = vmul.f32 %v936, %v974
        %v982 = vmul.f32 %v936, %v978
        %v983 = vmul.f32 %v941, %v966
        %v984 = vmul.f32 %v941, %v970
        %v985 = vmul.f32 %v941, %v974
        %v986 = vmul.f32 %v941, %v978
        %v987 = vadd.f32 %v925, %v979
        %v988 = vadd.f32 %v926, %v980
        %v989 = vadd.f32 %v927, %v981
        %v990 = vadd.f32 %v928, %v982
        %v991 = vadd.f32 %v929, %v983
        %v992 = vadd.f32 %v930, %v984
        %v993 = vadd.f32 %v931, %v985
        %v994 = vadd.f32 %v932, %v986
        %995 = vset.pattern.permute.xlu0 1
        %996 = vperm.xlu0 %995, %v392
        %v997 = vpop.permute.xlu0 %996
        %999 = vset.pattern.permute.xlu0 1
        %1000 = vperm.xlu0 %999, %v393
        %v1001 = vpop.permute.xlu0 %1000
        %v1003 = vlaneseq
        %v1004 = vshrl.u32 %v1003, 7
        %v1005 = vsub.s32 2, %v1004
        %v1006 = vrot.slane %v875, %v1005
        %v1007 = vlaneseq
        %v1008 = vshrl.u32 %v1007, 7
        %v1009 = vsub.s32 6, %v1008
        %v1010 = vrot.slane %v875, %v1009
        %v1011 = vlaneseq
        %v1012 = vshrl.u32 %v1011, 7
        %v1013 = vsub.s32 2, %v1012
        %v1014 = vrot.slane %v876, %v1013
        %v1015 = vlaneseq
        %v1016 = vshrl.u32 %v1015, 7
        %v1017 = vsub.s32 6, %v1016
        %v1018 = vrot.slane %v876, %v1017
        %v1023 = vlaneseq
        %v1024 = vshrl.u32 %v1023, 7
        %v1025 = vsub.s32 2, %v1024
        %v1026 = vrot.slane %v1006, %v1025
        %v1027 = vlaneseq
        %v1028 = vshrl.u32 %v1027, 7
        %v1029 = vsub.s32 2, %v1028
        %v1030 = vrot.slane %v1010, %v1029
        %v1031 = vlaneseq
        %v1032 = vshrl.u32 %v1031, 7
        %v1033 = vsub.s32 2, %v1032
        %v1034 = vrot.slane %v1014, %v1033
        %v1035 = vlaneseq
        %v1036 = vshrl.u32 %v1035, 7
        %v1037 = vsub.s32 2, %v1036
        %v1038 = vrot.slane %v1018, %v1037
        %v1039 = vmul.f32 %v997, %v1026
        %v1040 = vmul.f32 %v997, %v1030
        %v1041 = vmul.f32 %v997, %v1034
        %v1042 = vmul.f32 %v997, %v1038
        %v1043 = vmul.f32 %v1001, %v1026
        %v1044 = vmul.f32 %v1001, %v1030
        %v1045 = vmul.f32 %v1001, %v1034
        %v1046 = vmul.f32 %v1001, %v1038
        %v1047 = vadd.f32 %v987, %v1039
        %v1048 = vadd.f32 %v988, %v1040
        %v1049 = vadd.f32 %v989, %v1041
        %v1050 = vadd.f32 %v990, %v1042
        %v1051 = vadd.f32 %v991, %v1043
        %v1052 = vadd.f32 %v992, %v1044
        %v1053 = vadd.f32 %v993, %v1045
        %v1054 = vadd.f32 %v994, %v1046
        %1056 = vset.pattern.permute.xlu0 9
        %1057 = vperm.xlu0 %1056, %v873
        %v1058 = vpop.permute.xlu0 %1057
        %1061 = vset.pattern.permute.xlu0 9
        %1062 = vperm.xlu0 %1061, %v874
        %v1063 = vpop.permute.xlu0 %1062
        %v1065 = vlaneseq
        %v1066 = vshrl.u32 %v1065, 7
        %v1067 = vsub.s32 3, %v1066
        %v1068 = vrot.slane %v875, %v1067
        %v1069 = vlaneseq
        %v1070 = vshrl.u32 %v1069, 7
        %v1071 = vsub.s32 7, %v1070
        %v1072 = vrot.slane %v875, %v1071
        %v1073 = vlaneseq
        %v1074 = vshrl.u32 %v1073, 7
        %v1075 = vsub.s32 3, %v1074
        %v1076 = vrot.slane %v876, %v1075
        %v1077 = vlaneseq
        %v1078 = vshrl.u32 %v1077, 7
        %v1079 = vsub.s32 7, %v1078
        %v1080 = vrot.slane %v876, %v1079
        %v1085 = vlaneseq
        %v1086 = vshrl.u32 %v1085, 7
        %v1087 = vsub.s32 3, %v1086
        %v1088 = vrot.slane %v1068, %v1087
        %v1089 = vlaneseq
        %v1090 = vshrl.u32 %v1089, 7
        %v1091 = vsub.s32 3, %v1090
        %v1092 = vrot.slane %v1072, %v1091
        %v1093 = vlaneseq
        %v1094 = vshrl.u32 %v1093, 7
        %v1095 = vsub.s32 3, %v1094
        %v1096 = vrot.slane %v1076, %v1095
        %v1097 = vlaneseq
        %v1098 = vshrl.u32 %v1097, 7
        %v1099 = vsub.s32 3, %v1098
        %v1100 = vrot.slane %v1080, %v1099
        %v1101 = vmul.f32 %v1058, %v1088
        %v1102 = vmul.f32 %v1058, %v1092
        %v1103 = vmul.f32 %v1058, %v1096
        %v1104 = vmul.f32 %v1058, %v1100
        %v1105 = vmul.f32 %v1063, %v1088
        %v1106 = vmul.f32 %v1063, %v1092
        %v1107 = vmul.f32 %v1063, %v1096
        %v1108 = vmul.f32 %v1063, %v1100
        %v1109 = vadd.f32 %v1047, %v1101
        %v1110 = vadd.f32 %v1048, %v1102
        %v1111 = vadd.f32 %v1049, %v1103
        %v1112 = vadd.f32 %v1050, %v1104
        %v1113 = vadd.f32 %v1051, %v1105
        %v1114 = vadd.f32 %v1052, %v1106
        %v1115 = vadd.f32 %v1053, %v1107
        %v1116 = vadd.f32 %v1054, %v1108
        %v1117 = vld [vmem:[%s5] sm:$0xf]
        %v1119 = vlaneseq
        %v1120 = vshrl.u32 %v1119, 7
        %v1121 = vsub.s32 0, %v1120
        %v1122 = vrot.slane %v1117, %v1121
        %v1123 = vlaneseq
        %v1124 = vshrl.u32 %v1123, 7
        %v1125 = vsub.s32 1, %v1124
        %v1126 = vrot.slane %v1117, %v1125
        %v1127 = vlaneseq
        %v1128 = vshrl.u32 %v1127, 7
        %v1129 = vsub.s32 2, %v1128
        %v1130 = vrot.slane %v1117, %v1129
        %v1131 = vlaneseq
        %v1132 = vshrl.u32 %v1131, 7
        %v1133 = vsub.s32 3, %v1132
        %v1134 = vrot.slane %v1117, %v1133
        %v1139 = vadd.f32 %v1109, %v1122
        %v1140 = vadd.f32 %v1110, %v1126
        %v1141 = vadd.f32 %v1111, %v1130
        %v1142 = vadd.f32 %v1112, %v1134
        %v1143 = vadd.f32 %v1113, %v1122
        %v1144 = vadd.f32 %v1114, %v1126
        %v1145 = vadd.f32 %v1115, %v1130
        %v1146 = vadd.f32 %v1116, %v1134
        %v1147 = vpack.c.bf16 %v1143, %v1139
        %v1148 = vpack.c.bf16 %v1144, %v1140
        %v1149 = vpack.c.bf16 %v1145, %v1141
        %v1150 = vpack.c.bf16 %v1146, %v1142
        %v1151 = vtanh.bf16.pop %v1147
        %v1152 = vtanh.bf16.pop %v1148
        %v1153 = vtanh.bf16.pop %v1149
        %v1154 = vtanh.bf16.pop %v1150
        %v1155 = vld [vmem:[#allocation2] sm:$0xff]
        %v1156 = vld [vmem:[#allocation2 + $0x8] sm:$0xff]
        %v1157 = vld [vmem:[#allocation2 + $0x10] sm:$0xff]
        %v1158 = vld [vmem:[#allocation2 + $0x18] sm:$0xff]
        %v1159 = vld [vmem:[#allocation2 + $0x20] sm:$0xff]
        %v1160 = vld [vmem:[#allocation2 + $0x28] sm:$0xff]
        %v1161 = vld [vmem:[#allocation2 + $0x30] sm:$0xff]
        %v1162 = vld [vmem:[#allocation2 + $0x38] sm:$0xff]
        %v1163 = vld [vmem:[#allocation2 + $0x40] sm:$0xff]
        %v1164 = vld [vmem:[#allocation2 + $0x48] sm:$0xff]
        %v1165 = vld [vmem:[#allocation2 + $0x50] sm:$0xff]
        %v1166 = vld [vmem:[#allocation2 + $0x58] sm:$0xff]
        %v1167 = vld [vmem:[#allocation2 + $0x60] sm:$0xff]
        %v1168 = vld [vmem:[#allocation2 + $0x68] sm:$0xff]
        %v1169 = vld [vmem:[#allocation2 + $0x70] sm:$0xff]
        %v1170 = vld [vmem:[#allocation2 + $0x78] sm:$0xff]
        %v1171 = vld [vmem:[#allocation2 + $0x80] sm:$0xff]
        %v1172 = vld [vmem:[#allocation2 + $0x88] sm:$0xff]
        %v1173 = vld [vmem:[#allocation2 + $0x90] sm:$0xff]
        %v1174 = vld [vmem:[#allocation2 + $0x98] sm:$0xff]
        %v1175 = vld [vmem:[#allocation2 + $0xa0] sm:$0xff]
        %v1176 = vld [vmem:[#allocation2 + $0xa8] sm:$0xff]
        %v1177 = vld [vmem:[#allocation2 + $0xb0] sm:$0xff]
        %v1178 = vld [vmem:[#allocation2 + $0xb8] sm:$0xff]
        %v1179 = vld [vmem:[#allocation2 + $0xc0] sm:$0xff]
        %v1180 = vld [vmem:[#allocation2 + $0xc8] sm:$0xff]
        %v1181 = vld [vmem:[#allocation2 + $0xd0] sm:$0xff]
        %v1182 = vld [vmem:[#allocation2 + $0xd8] sm:$0xff]
        %v1183 = vld [vmem:[#allocation2 + $0xe0] sm:$0xff]
        %v1184 = vld [vmem:[#allocation2 + $0xe8] sm:$0xff]
        %v1185 = vld [vmem:[#allocation2 + $0xf0] sm:$0xff]
        %v1186 = vld [vmem:[#allocation2 + $0xf8] sm:$0xff]
        %v1187 = vld [vmem:[#allocation2 + $0x100] sm:$0xff]
        %v1188 = vld [vmem:[#allocation2 + $0x108] sm:$0xff]
        %v1189 = vld [vmem:[#allocation2 + $0x110] sm:$0xff]
        %v1190 = vld [vmem:[#allocation2 + $0x118] sm:$0xff]
        %v1191 = vld [vmem:[#allocation2 + $0x120] sm:$0xff]
        %v1192 = vld [vmem:[#allocation2 + $0x128] sm:$0xff]
        %v1193 = vld [vmem:[#allocation2 + $0x130] sm:$0xff]
        %v1194 = vld [vmem:[#allocation2 + $0x138] sm:$0xff]
        %v1195 = vld [vmem:[#allocation2 + $0x140] sm:$0xff]
        %v1196 = vld [vmem:[#allocation2 + $0x148] sm:$0xff]
        %v1197 = vld [vmem:[#allocation2 + $0x150] sm:$0xff]
        %v1198 = vld [vmem:[#allocation2 + $0x158] sm:$0xff]
        %v1199 = vld [vmem:[#allocation2 + $0x160] sm:$0xff]
        %v1200 = vld [vmem:[#allocation2 + $0x168] sm:$0xff]
        %v1201 = vld [vmem:[#allocation2 + $0x170] sm:$0xff]
        %v1202 = vld [vmem:[#allocation2 + $0x178] sm:$0xff]
        %v1203 = vld [vmem:[#allocation2 + $0x180] sm:$0xff]
        %v1204 = vld [vmem:[#allocation2 + $0x188] sm:$0xff]
        %v1205 = vld [vmem:[#allocation2 + $0x190] sm:$0xff]
        %v1206 = vld [vmem:[#allocation2 + $0x198] sm:$0xff]
        %v1207 = vld [vmem:[#allocation2 + $0x1a0] sm:$0xff]
        %v1208 = vld [vmem:[#allocation2 + $0x1a8] sm:$0xff]
        %v1209 = vld [vmem:[#allocation2 + $0x1b0] sm:$0xff]
        %v1210 = vld [vmem:[#allocation2 + $0x1b8] sm:$0xff]
        %v1211 = vld [vmem:[#allocation2 + $0x1c0] sm:$0xff]
        %v1212 = vld [vmem:[#allocation2 + $0x1c8] sm:$0xff]
        %v1213 = vld [vmem:[#allocation2 + $0x1d0] sm:$0xff]
        %v1214 = vld [vmem:[#allocation2 + $0x1d8] sm:$0xff]
        %v1215 = vld [vmem:[#allocation2 + $0x1e0] sm:$0xff]
        %v1216 = vld [vmem:[#allocation2 + $0x1e8] sm:$0xff]
        %v1217 = vld [vmem:[#allocation2 + $0x1f0] sm:$0xff]
        %v1218 = vld [vmem:[#allocation2 + $0x1f8] sm:$0xff]
        %v1219 = vld [vmem:[#allocation2 + $0x200] sm:$0xff]
        %v1220 = vld [vmem:[#allocation2 + $0x208] sm:$0xff]
        %v1221 = vld [vmem:[#allocation2 + $0x210] sm:$0xff]
        %v1222 = vld [vmem:[#allocation2 + $0x218] sm:$0xff]
        %v1223 = vld [vmem:[#allocation2 + $0x220] sm:$0xff]
        %v1224 = vld [vmem:[#allocation2 + $0x228] sm:$0xff]
        %v1225 = vld [vmem:[#allocation2 + $0x230] sm:$0xff]
        %v1226 = vld [vmem:[#allocation2 + $0x238] sm:$0xff]
        %v1227 = vld [vmem:[#allocation2 + $0x240] sm:$0xff]
        %v1228 = vld [vmem:[#allocation2 + $0x248] sm:$0xff]
        %v1229 = vld [vmem:[#allocation2 + $0x250] sm:$0xff]
        %v1230 = vld [vmem:[#allocation2 + $0x258] sm:$0xff]
        %v1231 = vld [vmem:[#allocation2 + $0x260] sm:$0xff]
        %v1232 = vld [vmem:[#allocation2 + $0x268] sm:$0xff]
        %v1233 = vld [vmem:[#allocation2 + $0x270] sm:$0xff]
        %v1234 = vld [vmem:[#allocation2 + $0x278] sm:$0xff]
        %v1235 = vld [vmem:[#allocation2 + $0x280] sm:$0xff]
        %v1236 = vld [vmem:[#allocation2 + $0x288] sm:$0xff]
        %v1237 = vld [vmem:[#allocation2 + $0x290] sm:$0xff]
        %v1238 = vld [vmem:[#allocation2 + $0x298] sm:$0xff]
        %v1239 = vld [vmem:[#allocation2 + $0x2a0] sm:$0xff]
        %v1240 = vld [vmem:[#allocation2 + $0x2a8] sm:$0xff]
        %v1241 = vld [vmem:[#allocation2 + $0x2b0] sm:$0xff]
        %v1242 = vld [vmem:[#allocation2 + $0x2b8] sm:$0xff]
        %v1243 = vld [vmem:[#allocation2 + $0x2c0] sm:$0xff]
        %v1244 = vld [vmem:[#allocation2 + $0x2c8] sm:$0xff]
        %v1245 = vld [vmem:[#allocation2 + $0x2d0] sm:$0xff]
        %v1246 = vld [vmem:[#allocation2 + $0x2d8] sm:$0xff]
        %v1247 = vld [vmem:[#allocation2 + $0x2e0] sm:$0xff]
        %v1248 = vld [vmem:[#allocation2 + $0x2e8] sm:$0xff]
        %v1249 = vld [vmem:[#allocation2 + $0x2f0] sm:$0xff]
        %v1250 = vld [vmem:[#allocation2 + $0x2f8] sm:$0xff]
        %v1251 = vld [vmem:[#allocation2 + $0x300] sm:$0xff]
        %v1252 = vld [vmem:[#allocation2 + $0x308] sm:$0xff]
        %v1253 = vld [vmem:[#allocation2 + $0x310] sm:$0xff]
        %v1254 = vld [vmem:[#allocation2 + $0x318] sm:$0xff]
        %v1255 = vld [vmem:[#allocation2 + $0x320] sm:$0xff]
        %v1256 = vld [vmem:[#allocation2 + $0x328] sm:$0xff]
        %v1257 = vld [vmem:[#allocation2 + $0x330] sm:$0xff]
        %v1258 = vld [vmem:[#allocation2 + $0x338] sm:$0xff]
        %v1259 = vld [vmem:[#allocation2 + $0x340] sm:$0xff]
        %v1260 = vld [vmem:[#allocation2 + $0x348] sm:$0xff]
        %v1261 = vld [vmem:[#allocation2 + $0x350] sm:$0xff]
        %v1262 = vld [vmem:[#allocation2 + $0x358] sm:$0xff]
        %v1263 = vld [vmem:[#allocation2 + $0x360] sm:$0xff]
        %v1264 = vld [vmem:[#allocation2 + $0x368] sm:$0xff]
        %v1265 = vld [vmem:[#allocation2 + $0x370] sm:$0xff]
        %v1266 = vld [vmem:[#allocation2 + $0x378] sm:$0xff]
        %v1267 = vld [vmem:[#allocation2 + $0x380] sm:$0xff]
        %v1268 = vld [vmem:[#allocation2 + $0x388] sm:$0xff]
        %v1269 = vld [vmem:[#allocation2 + $0x390] sm:$0xff]
        %v1270 = vld [vmem:[#allocation2 + $0x398] sm:$0xff]
        %v1271 = vld [vmem:[#allocation2 + $0x3a0] sm:$0xff]
        %v1272 = vld [vmem:[#allocation2 + $0x3a8] sm:$0xff]
        %v1273 = vld [vmem:[#allocation2 + $0x3b0] sm:$0xff]
        %v1274 = vld [vmem:[#allocation2 + $0x3b8] sm:$0xff]
        %v1275 = vld [vmem:[#allocation2 + $0x3c0] sm:$0xff]
        %v1276 = vld [vmem:[#allocation2 + $0x3c8] sm:$0xff]
        %v1277 = vld [vmem:[#allocation2 + $0x3d0] sm:$0xff]
        %v1278 = vld [vmem:[#allocation2 + $0x3d8] sm:$0xff]
        %v1279 = vld [vmem:[#allocation2 + $0x3e0] sm:$0xff]
        %v1280 = vld [vmem:[#allocation2 + $0x3e8] sm:$0xff]
        %v1281 = vld [vmem:[#allocation2 + $0x3f0] sm:$0xff]
        %v1282 = vld [vmem:[#allocation2 + $0x3f8] sm:$0xff]
        %v1283 = vld [vmem:[%s7] sm:$0xf]
        %v1285 = vlaneseq
        %v1286 = vshrl.u32 %v1285, 7
        %v1287 = vsub.s32 0, %v1286
        %v1288 = vrot.slane %v1283, %v1287
        %v1289 = vlaneseq
        %v1290 = vshrl.u32 %v1289, 7
        %v1291 = vsub.s32 1, %v1290
        %v1292 = vrot.slane %v1283, %v1291
        %v1293 = vlaneseq
        %v1294 = vshrl.u32 %v1293, 7
        %v1295 = vsub.s32 2, %v1294
        %v1296 = vrot.slane %v1283, %v1295
        %v1297 = vlaneseq
        %v1298 = vshrl.u32 %v1297, 7
        %v1299 = vsub.s32 3, %v1298
        %v1300 = vrot.slane %v1283, %v1299
        %v1433 = vunpack.c.l.b16 %v1155
        %v1434 = vunpack.c.h.b16 %v1155
        %v1435 = vunpack.c.l.b16 %v1156
        %v1436 = vunpack.c.h.b16 %v1156
        %v1437 = vunpack.c.l.b16 %v1157
        %v1438 = vunpack.c.h.b16 %v1157
        %v1439 = vunpack.c.l.b16 %v1158
        %v1440 = vunpack.c.h.b16 %v1158
        %v1441 = vunpack.c.l.b16 %v1159
        %v1442 = vunpack.c.h.b16 %v1159
        %v1443 = vunpack.c.l.b16 %v1160
        %v1444 = vunpack.c.h.b16 %v1160
        %v1445 = vunpack.c.l.b16 %v1161
        %v1446 = vunpack.c.h.b16 %v1161
        %v1447 = vunpack.c.l.b16 %v1162
        %v1448 = vunpack.c.h.b16 %v1162
        %v1449 = vunpack.c.l.b16 %v1163
        %v1450 = vunpack.c.h.b16 %v1163
        %v1451 = vunpack.c.l.b16 %v1164
        %v1452 = vunpack.c.h.b16 %v1164
        %v1453 = vunpack.c.l.b16 %v1165
        %v1454 = vunpack.c.h.b16 %v1165
        %v1455 = vunpack.c.l.b16 %v1166
        %v1456 = vunpack.c.h.b16 %v1166
        %v1457 = vunpack.c.l.b16 %v1167
        %v1458 = vunpack.c.h.b16 %v1167
        %v1459 = vunpack.c.l.b16 %v1168
        %v1460 = vunpack.c.h.b16 %v1168
        %v1461 = vunpack.c.l.b16 %v1169
        %v1462 = vunpack.c.h.b16 %v1169
        %v1463 = vunpack.c.l.b16 %v1170
        %v1464 = vunpack.c.h.b16 %v1170
        %v1465 = vunpack.c.l.b16 %v1171
        %v1466 = vunpack.c.h.b16 %v1171
        %v1467 = vunpack.c.l.b16 %v1172
        %v1468 = vunpack.c.h.b16 %v1172
        %v1469 = vunpack.c.l.b16 %v1173
        %v1470 = vunpack.c.h.b16 %v1173
        %v1471 = vunpack.c.l.b16 %v1174
        %v1472 = vunpack.c.h.b16 %v1174
        %v1473 = vunpack.c.l.b16 %v1175
        %v1474 = vunpack.c.h.b16 %v1175
        %v1475 = vunpack.c.l.b16 %v1176
        %v1476 = vunpack.c.h.b16 %v1176
        %v1477 = vunpack.c.l.b16 %v1177
        %v1478 = vunpack.c.h.b16 %v1177
        %v1479 = vunpack.c.l.b16 %v1178
        %v1480 = vunpack.c.h.b16 %v1178
        %v1481 = vunpack.c.l.b16 %v1179
        %v1482 = vunpack.c.h.b16 %v1179
        %v1483 = vunpack.c.l.b16 %v1180
        %v1484 = vunpack.c.h.b16 %v1180
        %v1485 = vunpack.c.l.b16 %v1181
        %v1486 = vunpack.c.h.b16 %v1181
        %v1487 = vunpack.c.l.b16 %v1182
        %v1488 = vunpack.c.h.b16 %v1182
        %v1489 = vunpack.c.l.b16 %v1183
        %v1490 = vunpack.c.h.b16 %v1183
        %v1491 = vunpack.c.l.b16 %v1184
        %v1492 = vunpack.c.h.b16 %v1184
        %v1493 = vunpack.c.l.b16 %v1185
        %v1494 = vunpack.c.h.b16 %v1185
        %v1495 = vunpack.c.l.b16 %v1186
        %v1496 = vunpack.c.h.b16 %v1186
        %v1497 = vunpack.c.l.b16 %v1187
        %v1498 = vunpack.c.h.b16 %v1187
        %v1499 = vunpack.c.l.b16 %v1188
        %v1500 = vunpack.c.h.b16 %v1188
        %v1501 = vunpack.c.l.b16 %v1189
        %v1502 = vunpack.c.h.b16 %v1189
        %v1503 = vunpack.c.l.b16 %v1190
        %v1504 = vunpack.c.h.b16 %v1190
        %v1505 = vunpack.c.l.b16 %v1191
        %v1506 = vunpack.c.h.b16 %v1191
        %v1507 = vunpack.c.l.b16 %v1192
        %v1508 = vunpack.c.h.b16 %v1192
        %v1509 = vunpack.c.l.b16 %v1193
        %v1510 = vunpack.c.h.b16 %v1193
        %v1511 = vunpack.c.l.b16 %v1194
        %v1512 = vunpack.c.h.b16 %v1194
        %v1513 = vunpack.c.l.b16 %v1195
        %v1514 = vunpack.c.h.b16 %v1195
        %v1515 = vunpack.c.l.b16 %v1196
        %v1516 = vunpack.c.h.b16 %v1196
        %v1517 = vunpack.c.l.b16 %v1197
        %v1518 = vunpack.c.h.b16 %v1197
        %v1519 = vunpack.c.l.b16 %v1198
        %v1520 = vunpack.c.h.b16 %v1198
        %v1521 = vunpack.c.l.b16 %v1199
        %v1522 = vunpack.c.h.b16 %v1199
        %v1523 = vunpack.c.l.b16 %v1200
        %v1524 = vunpack.c.h.b16 %v1200
        %v1525 = vunpack.c.l.b16 %v1201
        %v1526 = vunpack.c.h.b16 %v1201
        %v1527 = vunpack.c.l.b16 %v1202
        %v1528 = vunpack.c.h.b16 %v1202
        %v1529 = vunpack.c.l.b16 %v1203
        %v1530 = vunpack.c.h.b16 %v1203
        %v1531 = vunpack.c.l.b16 %v1204
        %v1532 = vunpack.c.h.b16 %v1204
        %v1533 = vunpack.c.l.b16 %v1205
        %v1534 = vunpack.c.h.b16 %v1205
        %v1535 = vunpack.c.l.b16 %v1206
        %v1536 = vunpack.c.h.b16 %v1206
        %v1537 = vunpack.c.l.b16 %v1207
        %v1538 = vunpack.c.h.b16 %v1207
        %v1539 = vunpack.c.l.b16 %v1208
        %v1540 = vunpack.c.h.b16 %v1208
        %v1541 = vunpack.c.l.b16 %v1209
        %v1542 = vunpack.c.h.b16 %v1209
        %v1543 = vunpack.c.l.b16 %v1210
        %v1544 = vunpack.c.h.b16 %v1210
        %v1545 = vunpack.c.l.b16 %v1211
        %v1546 = vunpack.c.h.b16 %v1211
        %v1547 = vunpack.c.l.b16 %v1212
        %v1548 = vunpack.c.h.b16 %v1212
        %v1549 = vunpack.c.l.b16 %v1213
        %v1550 = vunpack.c.h.b16 %v1213
        %v1551 = vunpack.c.l.b16 %v1214
        %v1552 = vunpack.c.h.b16 %v1214
        %v1553 = vunpack.c.l.b16 %v1215
        %v1554 = vunpack.c.h.b16 %v1215
        %v1555 = vunpack.c.l.b16 %v1216
        %v1556 = vunpack.c.h.b16 %v1216
        %v1557 = vunpack.c.l.b16 %v1217
        %v1558 = vunpack.c.h.b16 %v1217
        %v1559 = vunpack.c.l.b16 %v1218
        %v1560 = vunpack.c.h.b16 %v1218
        %v1561 = vunpack.c.l.b16 %v1219
        %v1562 = vunpack.c.h.b16 %v1219
        %v1563 = vunpack.c.l.b16 %v1220
        %v1564 = vunpack.c.h.b16 %v1220
        %v1565 = vunpack.c.l.b16 %v1221
        %v1566 = vunpack.c.h.b16 %v1221
        %v1567 = vunpack.c.l.b16 %v1222
        %v1568 = vunpack.c.h.b16 %v1222
        %v1569 = vunpack.c.l.b16 %v1223
        %v1570 = vunpack.c.h.b16 %v1223
        %v1571 = vunpack.c.l.b16 %v1224
        %v1572 = vunpack.c.h.b16 %v1224
        %v1573 = vunpack.c.l.b16 %v1225
        %v1574 = vunpack.c.h.b16 %v1225
        %v1575 = vunpack.c.l.b16 %v1226
        %v1576 = vunpack.c.h.b16 %v1226
        %v1577 = vunpack.c.l.b16 %v1227
        %v1578 = vunpack.c.h.b16 %v1227
        %v1579 = vunpack.c.l.b16 %v1228
        %v1580 = vunpack.c.h.b16 %v1228
        %v1581 = vunpack.c.l.b16 %v1229
        %v1582 = vunpack.c.h.b16 %v1229
        %v1583 = vunpack.c.l.b16 %v1230
        %v1584 = vunpack.c.h.b16 %v1230
        %v1585 = vunpack.c.l.b16 %v1231
        %v1586 = vunpack.c.h.b16 %v1231
        %v1587 = vunpack.c.l.b16 %v1232
        %v1588 = vunpack.c.h.b16 %v1232
        %v1589 = vunpack.c.l.b16 %v1233
        %v1590 = vunpack.c.h.b16 %v1233
        %v1591 = vunpack.c.l.b16 %v1234
        %v1592 = vunpack.c.h.b16 %v1234
        %v1593 = vunpack.c.l.b16 %v1235
        %v1594 = vunpack.c.h.b16 %v1235
        %v1595 = vunpack.c.l.b16 %v1236
        %v1596 = vunpack.c.h.b16 %v1236
        %v1597 = vunpack.c.l.b16 %v1237
        %v1598 = vunpack.c.h.b16 %v1237
        %v1599 = vunpack.c.l.b16 %v1238
        %v1600 = vunpack.c.h.b16 %v1238
        %v1601 = vunpack.c.l.b16 %v1239
        %v1602 = vunpack.c.h.b16 %v1239
        %v1603 = vunpack.c.l.b16 %v1240
        %v1604 = vunpack.c.h.b16 %v1240
        %v1605 = vunpack.c.l.b16 %v1241
        %v1606 = vunpack.c.h.b16 %v1241
        %v1607 = vunpack.c.l.b16 %v1242
        %v1608 = vunpack.c.h.b16 %v1242
        %v1609 = vunpack.c.l.b16 %v1243
        %v1610 = vunpack.c.h.b16 %v1243
        %v1611 = vunpack.c.l.b16 %v1244
        %v1612 = vunpack.c.h.b16 %v1244
        %v1613 = vunpack.c.l.b16 %v1245
        %v1614 = vunpack.c.h.b16 %v1245
        %v1615 = vunpack.c.l.b16 %v1246
        %v1616 = vunpack.c.h.b16 %v1246
        %v1617 = vunpack.c.l.b16 %v1247
        %v1618 = vunpack.c.h.b16 %v1247
        %v1619 = vunpack.c.l.b16 %v1248
        %v1620 = vunpack.c.h.b16 %v1248
        %v1621 = vunpack.c.l.b16 %v1249
        %v1622 = vunpack.c.h.b16 %v1249
        %v1623 = vunpack.c.l.b16 %v1250
        %v1624 = vunpack.c.h.b16 %v1250
        %v1625 = vunpack.c.l.b16 %v1251
        %v1626 = vunpack.c.h.b16 %v1251
        %v1627 = vunpack.c.l.b16 %v1252
        %v1628 = vunpack.c.h.b16 %v1252
        %v1629 = vunpack.c.l.b16 %v1253
        %v1630 = vunpack.c.h.b16 %v1253
        %v1631 = vunpack.c.l.b16 %v1254
        %v1632 = vunpack.c.h.b16 %v1254
        %v1633 = vunpack.c.l.b16 %v1255
        %v1634 = vunpack.c.h.b16 %v1255
        %v1635 = vunpack.c.l.b16 %v1256
        %v1636 = vunpack.c.h.b16 %v1256
        %v1637 = vunpack.c.l.b16 %v1257
        %v1638 = vunpack.c.h.b16 %v1257
        %v1639 = vunpack.c.l.b16 %v1258
        %v1640 = vunpack.c.h.b16 %v1258
        %v1641 = vunpack.c.l.b16 %v1259
        %v1642 = vunpack.c.h.b16 %v1259
        %v1643 = vunpack.c.l.b16 %v1260
        %v1644 = vunpack.c.h.b16 %v1260
        %v1645 = vunpack.c.l.b16 %v1261
        %v1646 = vunpack.c.h.b16 %v1261
        %v1647 = vunpack.c.l.b16 %v1262
        %v1648 = vunpack.c.h.b16 %v1262
        %v1649 = vunpack.c.l.b16 %v1263
        %v1650 = vunpack.c.h.b16 %v1263
        %v1651 = vunpack.c.l.b16 %v1264
        %v1652 = vunpack.c.h.b16 %v1264
        %v1653 = vunpack.c.l.b16 %v1265
        %v1654 = vunpack.c.h.b16 %v1265
        %v1655 = vunpack.c.l.b16 %v1266
        %v1656 = vunpack.c.h.b16 %v1266
        %v1657 = vunpack.c.l.b16 %v1267
        %v1658 = vunpack.c.h.b16 %v1267
        %v1659 = vunpack.c.l.b16 %v1268
        %v1660 = vunpack.c.h.b16 %v1268
        %v1661 = vunpack.c.l.b16 %v1269
        %v1662 = vunpack.c.h.b16 %v1269
        %v1663 = vunpack.c.l.b16 %v1270
        %v1664 = vunpack.c.h.b16 %v1270
        %v1665 = vunpack.c.l.b16 %v1271
        %v1666 = vunpack.c.h.b16 %v1271
        %v1667 = vunpack.c.l.b16 %v1272
        %v1668 = vunpack.c.h.b16 %v1272
        %v1669 = vunpack.c.l.b16 %v1273
        %v1670 = vunpack.c.h.b16 %v1273
        %v1671 = vunpack.c.l.b16 %v1274
        %v1672 = vunpack.c.h.b16 %v1274
        %v1673 = vunpack.c.l.b16 %v1275
        %v1674 = vunpack.c.h.b16 %v1275
        %v1675 = vunpack.c.l.b16 %v1276
        %v1676 = vunpack.c.h.b16 %v1276
        %v1677 = vunpack.c.l.b16 %v1277
        %v1678 = vunpack.c.h.b16 %v1277
        %v1679 = vunpack.c.l.b16 %v1278
        %v1680 = vunpack.c.h.b16 %v1278
        %v1681 = vunpack.c.l.b16 %v1279
        %v1682 = vunpack.c.h.b16 %v1279
        %v1683 = vunpack.c.l.b16 %v1280
        %v1684 = vunpack.c.h.b16 %v1280
        %v1685 = vunpack.c.l.b16 %v1281
        %v1686 = vunpack.c.h.b16 %v1281
        %v1687 = vunpack.c.l.b16 %v1282
        %v1688 = vunpack.c.h.b16 %v1282
        %v1689 = vpack.c.b16 %v1437, %v1433
        %v1690 = vpack.c.b16 %v1438, %v1434
        %v1691 = vpack.c.b16 %v1439, %v1435
        %v1692 = vpack.c.b16 %v1440, %v1436
        %v1693 = vpack.c.b16 %v1445, %v1441
        %v1694 = vpack.c.b16 %v1446, %v1442
        %v1695 = vpack.c.b16 %v1447, %v1443
        %v1696 = vpack.c.b16 %v1448, %v1444
        %v1697 = vpack.c.b16 %v1453, %v1449
        %v1698 = vpack.c.b16 %v1454, %v1450
        %v1699 = vpack.c.b16 %v1455, %v1451
        %v1700 = vpack.c.b16 %v1456, %v1452
        %v1701 = vpack.c.b16 %v1461, %v1457
        %v1702 = vpack.c.b16 %v1462, %v1458
        %v1703 = vpack.c.b16 %v1463, %v1459
        %v1704 = vpack.c.b16 %v1464, %v1460
        %v1705 = vpack.c.b16 %v1469, %v1465
        %v1706 = vpack.c.b16 %v1470, %v1466
        %v1707 = vpack.c.b16 %v1471, %v1467
        %v1708 = vpack.c.b16 %v1472, %v1468
        %v1709 = vpack.c.b16 %v1477, %v1473
        %v1710 = vpack.c.b16 %v1478, %v1474
        %v1711 = vpack.c.b16 %v1479, %v1475
        %v1712 = vpack.c.b16 %v1480, %v1476
        %v1713 = vpack.c.b16 %v1485, %v1481
        %v1714 = vpack.c.b16 %v1486, %v1482
        %v1715 = vpack.c.b16 %v1487, %v1483
        %v1716 = vpack.c.b16 %v1488, %v1484
        %v1717 = vpack.c.b16 %v1493, %v1489
        %v1718 = vpack.c.b16 %v1494, %v1490
        %v1719 = vpack.c.b16 %v1495, %v1491
        %v1720 = vpack.c.b16 %v1496, %v1492
        %v1721 = vpack.c.b16 %v1501, %v1497
        %v1722 = vpack.c.b16 %v1502, %v1498
        %v1723 = vpack.c.b16 %v1503, %v1499
        %v1724 = vpack.c.b16 %v1504, %v1500
        %v1725 = vpack.c.b16 %v1509, %v1505
        %v1726 = vpack.c.b16 %v1510, %v1506
        %v1727 = vpack.c.b16 %v1511, %v1507
        %v1728 = vpack.c.b16 %v1512, %v1508
        %v1729 = vpack.c.b16 %v1517, %v1513
        %v1730 = vpack.c.b16 %v1518, %v1514
        %v1731 = vpack.c.b16 %v1519, %v1515
        %v1732 = vpack.c.b16 %v1520, %v1516
        %v1733 = vpack.c.b16 %v1525, %v1521
        %v1734 = vpack.c.b16 %v1526, %v1522
        %v1735 = vpack.c.b16 %v1527, %v1523
        %v1736 = vpack.c.b16 %v1528, %v1524
        %v1737 = vpack.c.b16 %v1533, %v1529
        %v1738 = vpack.c.b16 %v1534, %v1530
        %v1739 = vpack.c.b16 %v1535, %v1531
        %v1740 = vpack.c.b16 %v1536, %v1532
        %v1741 = vpack.c.b16 %v1541, %v1537
        %v1742 = vpack.c.b16 %v1542, %v1538
        %v1743 = vpack.c.b16 %v1543, %v1539
        %v1744 = vpack.c.b16 %v1544, %v1540
        %v1745 = vpack.c.b16 %v1549, %v1545
        %v1746 = vpack.c.b16 %v1550, %v1546
        %v1747 = vpack.c.b16 %v1551, %v1547
        %v1748 = vpack.c.b16 %v1552, %v1548
        %v1749 = vpack.c.b16 %v1557, %v1553
        %v1750 = vpack.c.b16 %v1558, %v1554
        %v1751 = vpack.c.b16 %v1559, %v1555
        %v1752 = vpack.c.b16 %v1560, %v1556
        %v1753 = vpack.c.b16 %v1565, %v1561
        %v1754 = vpack.c.b16 %v1566, %v1562
        %v1755 = vpack.c.b16 %v1567, %v1563
        %v1756 = vpack.c.b16 %v1568, %v1564
        %v1757 = vpack.c.b16 %v1573, %v1569
        %v1758 = vpack.c.b16 %v1574, %v1570
        %v1759 = vpack.c.b16 %v1575, %v1571
        %v1760 = vpack.c.b16 %v1576, %v1572
        %v1761 = vpack.c.b16 %v1581, %v1577
        %v1762 = vpack.c.b16 %v1582, %v1578
        %v1763 = vpack.c.b16 %v1583, %v1579
        %v1764 = vpack.c.b16 %v1584, %v1580
        %v1765 = vpack.c.b16 %v1589, %v1585
        %v1766 = vpack.c.b16 %v1590, %v1586
        %v1767 = vpack.c.b16 %v1591, %v1587
        %v1768 = vpack.c.b16 %v1592, %v1588
        %v1769 = vpack.c.b16 %v1597, %v1593
        %v1770 = vpack.c.b16 %v1598, %v1594
        %v1771 = vpack.c.b16 %v1599, %v1595
        %v1772 = vpack.c.b16 %v1600, %v1596
        %v1773 = vpack.c.b16 %v1605, %v1601
        %v1774 = vpack.c.b16 %v1606, %v1602
        %v1775 = vpack.c.b16 %v1607, %v1603
        %v1776 = vpack.c.b16 %v1608, %v1604
        %v1777 = vpack.c.b16 %v1613, %v1609
        %v1778 = vpack.c.b16 %v1614, %v1610
        %v1779 = vpack.c.b16 %v1615, %v1611
        %v1780 = vpack.c.b16 %v1616, %v1612
        %v1781 = vpack.c.b16 %v1621, %v1617
        %v1782 = vpack.c.b16 %v1622, %v1618
        %v1783 = vpack.c.b16 %v1623, %v1619
        %v1784 = vpack.c.b16 %v1624, %v1620
        %v1785 = vpack.c.b16 %v1629, %v1625
        %v1786 = vpack.c.b16 %v1630, %v1626
        %v1787 = vpack.c.b16 %v1631, %v1627
        %v1788 = vpack.c.b16 %v1632, %v1628
        %v1789 = vpack.c.b16 %v1637, %v1633
        %v1790 = vpack.c.b16 %v1638, %v1634
        %v1791 = vpack.c.b16 %v1639, %v1635
        %v1792 = vpack.c.b16 %v1640, %v1636
        %v1793 = vpack.c.b16 %v1645, %v1641
        %v1794 = vpack.c.b16 %v1646, %v1642
        %v1795 = vpack.c.b16 %v1647, %v1643
        %v1796 = vpack.c.b16 %v1648, %v1644
        %v1797 = vpack.c.b16 %v1653, %v1649
        %v1798 = vpack.c.b16 %v1654, %v1650
        %v1799 = vpack.c.b16 %v1655, %v1651
        %v1800 = vpack.c.b16 %v1656, %v1652
        %v1801 = vpack.c.b16 %v1661, %v1657
        %v1802 = vpack.c.b16 %v1662, %v1658
        %v1803 = vpack.c.b16 %v1663, %v1659
        %v1804 = vpack.c.b16 %v1664, %v1660
        %v1805 = vpack.c.b16 %v1669, %v1665
        %v1806 = vpack.c.b16 %v1670, %v1666
        %v1807 = vpack.c.b16 %v1671, %v1667
        %v1808 = vpack.c.b16 %v1672, %v1668
        %v1809 = vpack.c.b16 %v1677, %v1673
        %v1810 = vpack.c.b16 %v1678, %v1674
        %v1811 = vpack.c.b16 %v1679, %v1675
        %v1812 = vpack.c.b16 %v1680, %v1676
        %v1813 = vpack.c.b16 %v1685, %v1681
        %v1814 = vpack.c.b16 %v1686, %v1682
        %v1815 = vpack.c.b16 %v1687, %v1683
        %v1816 = vpack.c.b16 %v1688, %v1684
        %1945 = vmatprep.subr.bf16.mxu0 %v1718
        %1946 = vmatpush1.bf16.msra.mxu0 %v1717
        %1947 = vmatprep.subr.bf16.mxu0 %v1714
        %1948 = vmatpush1.bf16.msra.mxu0 %v1713
        %1949 = vmatprep.subr.bf16.mxu0 %v1710
        %1950 = vmatpush1.bf16.msra.mxu0 %v1709
        %1951 = vmatprep.subr.bf16.mxu0 %v1706
        %1952 = vmatpush1.bf16.msra.mxu0 %v1705
        %1953 = vmatprep.subr.bf16.mxu0 %v1702
        %1954 = vmatpush1.bf16.msra.mxu0 %v1701
        %1955 = vmatprep.subr.bf16.mxu0 %v1698
        %1956 = vmatpush1.bf16.msra.mxu0 %v1697
        %1957 = vmatprep.subr.bf16.mxu0 %v1694
        %1958 = vmatpush1.bf16.msra.mxu0 %v1693
        %1959 = vmatprep.subr.bf16.mxu0 %v1690
        %1960 = vmatpush1.bf16.msra.mxu0 %v1689
        %1961 = vmatprep.subr.bf16.mxu0 %v1750
        %1962 = vmatpush2.bf16.msra.mxu0 %v1749
        %1963 = vmatprep.subr.bf16.mxu0 %v1746
        %1964 = vmatpush2.bf16.msra.mxu0 %v1745
        %1965 = vmatprep.subr.bf16.mxu0 %v1742
        %1966 = vmatpush2.bf16.msra.mxu0 %v1741
        %1967 = vmatprep.subr.bf16.mxu0 %v1738
        %1968 = vmatpush2.bf16.msra.mxu0 %v1737
        %1969 = vmatprep.subr.bf16.mxu0 %v1734
        %1970 = vmatpush2.bf16.msra.mxu0 %v1733
        %1971 = vmatprep.subr.bf16.mxu0 %v1730
        %1972 = vmatpush2.bf16.msra.mxu0 %v1729
        %1973 = vmatprep.subr.bf16.mxu0 %v1726
        %1974 = vmatpush2.bf16.msra.mxu0 %v1725
        %1975 = vmatprep.subr.bf16.mxu0 %v1722
        %1976 = vmatpush2.bf16.msra.mxu0 %v1721
        %1977 = vmatprep.mubr.bf16.mxu0 %v1152
        %1978 = vmatmul.mubr.bf16.gmra.mxu0 %v1151
        %v1979 = vpop.f32.mrf.mxu0
        %v1980 = vadd.f32 %v1288, %v1979
        %v1981 = vpop.f32.mrf.mxu0
        %v1982 = vadd.f32 %v1292, %v1981
        %v1983 = vpop.f32.mrf.mxu0
        %v1984 = vadd.f32 %v1288, %v1983
        %v1985 = vpop.f32.mrf.mxu0
        %v1986 = vadd.f32 %v1292, %v1985
        %1987 = vdwg.mxu0
        %1988 = vmatprep.subr.bf16.mxu0 %v1782
        %1989 = vmatpush1.bf16.msra.mxu0 %v1781
        %1990 = vmatprep.subr.bf16.mxu0 %v1778
        %1991 = vmatpush1.bf16.msra.mxu0 %v1777
        %1992 = vmatprep.subr.bf16.mxu0 %v1774
        %1993 = vmatpush1.bf16.msra.mxu0 %v1773
        %1994 = vmatprep.subr.bf16.mxu0 %v1770
        %1995 = vmatpush1.bf16.msra.mxu0 %v1769
        %1996 = vmatprep.subr.bf16.mxu0 %v1766
        %1997 = vmatpush1.bf16.msra.mxu0 %v1765
        %1998 = vmatprep.subr.bf16.mxu0 %v1762
        %1999 = vmatpush1.bf16.msra.mxu0 %v1761
        %2000 = vmatprep.subr.bf16.mxu0 %v1758
        %2001 = vmatpush1.bf16.msra.mxu0 %v1757
        %2002 = vmatprep.subr.bf16.mxu0 %v1754
        %2003 = vmatpush1.bf16.msra.mxu0 %v1753
        %2004 = vmatprep.subr.bf16.mxu0 %v1814
        %2005 = vmatpush2.bf16.msra.mxu0 %v1813
        %2006 = vmatprep.subr.bf16.mxu0 %v1810
        %2007 = vmatpush2.bf16.msra.mxu0 %v1809
        %2008 = vmatprep.subr.bf16.mxu0 %v1806
        %2009 = vmatpush2.bf16.msra.mxu0 %v1805
        %2010 = vmatprep.subr.bf16.mxu0 %v1802
        %2011 = vmatpush2.bf16.msra.mxu0 %v1801
        %2012 = vmatprep.subr.bf16.mxu0 %v1798
        %2013 = vmatpush2.bf16.msra.mxu0 %v1797
        %2014 = vmatprep.subr.bf16.mxu0 %v1794
        %2015 = vmatpush2.bf16.msra.mxu0 %v1793
        %2016 = vmatprep.subr.bf16.mxu0 %v1790
        %2017 = vmatpush2.bf16.msra.mxu0 %v1789
        %2018 = vmatprep.subr.bf16.mxu0 %v1786
        %2019 = vmatpush2.bf16.msra.mxu0 %v1785
        %2020 = vmatprep.mubr.bf16.mxu0 %v1154
        %2021 = vmatmul.mubr.bf16.gmra.mxu0 %v1153
        %v2022 = vpop.f32.mrf.mxu0
        %v2023 = vadd.f32 %v1980, %v2022
        %v2024 = vpop.f32.mrf.mxu0
        %v2025 = vadd.f32 %v1982, %v2024
        %v2026 = vpop.f32.mrf.mxu0
        %v2027 = vadd.f32 %v1984, %v2026
        %v2028 = vpop.f32.mrf.mxu0
        %v2029 = vadd.f32 %v1986, %v2028
        %2030 = vdwg.mxu0
        %2031 = vmatprep.subr.bf16.mxu0 %v1720
        %2032 = vmatpush1.bf16.msra.mxu0 %v1719
        %2033 = vmatprep.subr.bf16.mxu0 %v1716
        %2034 = vmatpush1.bf16.msra.mxu0 %v1715
        %2035 = vmatprep.subr.bf16.mxu0 %v1712
        %2036 = vmatpush1.bf16.msra.mxu0 %v1711
        %2037 = vmatprep.subr.bf16.mxu0 %v1708
        %2038 = vmatpush1.bf16.msra.mxu0 %v1707
        %2039 = vmatprep.subr.bf16.mxu0 %v1704
        %2040 = vmatpush1.bf16.msra.mxu0 %v1703
        %2041 = vmatprep.subr.bf16.mxu0 %v1700
        %2042 = vmatpush1.bf16.msra.mxu0 %v1699
        %2043 = vmatprep.subr.bf16.mxu0 %v1696
        %2044 = vmatpush1.bf16.msra.mxu0 %v1695
        %2045 = vmatprep.subr.bf16.mxu0 %v1692
        %2046 = vmatpush1.bf16.msra.mxu0 %v1691
        %2047 = vmatprep.subr.bf16.mxu0 %v1752
        %2048 = vmatpush2.bf16.msra.mxu0 %v1751
        %2049 = vmatprep.subr.bf16.mxu0 %v1748
        %2050 = vmatpush2.bf16.msra.mxu0 %v1747
        %2051 = vmatprep.subr.bf16.mxu0 %v1744
        %2052 = vmatpush2.bf16.msra.mxu0 %v1743
        %2053 = vmatprep.subr.bf16.mxu0 %v1740
        %2054 = vmatpush2.bf16.msra.mxu0 %v1739
        %2055 = vmatprep.subr.bf16.mxu0 %v1736
        %2056 = vmatpush2.bf16.msra.mxu0 %v1735
        %2057 = vmatprep.subr.bf16.mxu0 %v1732
        %2058 = vmatpush2.bf16.msra.mxu0 %v1731
        %2059 = vmatprep.subr.bf16.mxu0 %v1728
        %2060 = vmatpush2.bf16.msra.mxu0 %v1727
        %2061 = vmatprep.subr.bf16.mxu0 %v1724
        %2062 = vmatpush2.bf16.msra.mxu0 %v1723
        %2063 = vmatprep.mubr.bf16.mxu0 %v1152
        %2064 = vmatmul.mubr.bf16.gmra.mxu0 %v1151
        %v2065 = vpop.f32.mrf.mxu0
        %v2066 = vadd.f32 %v1296, %v2065
        %v2067 = vpop.f32.mrf.mxu0
        %v2068 = vadd.f32 %v1300, %v2067
        %v2069 = vpop.f32.mrf.mxu0
        %v2070 = vadd.f32 %v1296, %v2069
        %v2071 = vpop.f32.mrf.mxu0
        %v2072 = vadd.f32 %v1300, %v2071
        %2073 = vdwg.mxu0
        %2074 = vmatprep.subr.bf16.mxu0 %v1784
        %2075 = vmatpush1.bf16.msra.mxu0 %v1783
        %2076 = vmatprep.subr.bf16.mxu0 %v1780
        %2077 = vmatpush1.bf16.msra.mxu0 %v1779
        %2078 = vmatprep.subr.bf16.mxu0 %v1776
        %2079 = vmatpush1.bf16.msra.mxu0 %v1775
        %2080 = vmatprep.subr.bf16.mxu0 %v1772
        %2081 = vmatpush1.bf16.msra.mxu0 %v1771
        %2082 = vmatprep.subr.bf16.mxu0 %v1768
        %2083 = vmatpush1.bf16.msra.mxu0 %v1767
        %2084 = vmatprep.subr.bf16.mxu0 %v1764
        %2085 = vmatpush1.bf16.msra.mxu0 %v1763
        %2086 = vmatprep.subr.bf16.mxu0 %v1760
        %2087 = vmatpush1.bf16.msra.mxu0 %v1759
        %2088 = vmatprep.subr.bf16.mxu0 %v1756
        %2089 = vmatpush1.bf16.msra.mxu0 %v1755
        %2090 = vmatprep.subr.bf16.mxu0 %v1816
        %2091 = vmatpush2.bf16.msra.mxu0 %v1815
        %2092 = vmatprep.subr.bf16.mxu0 %v1812
        %2093 = vmatpush2.bf16.msra.mxu0 %v1811
        %2094 = vmatprep.subr.bf16.mxu0 %v1808
        %2095 = vmatpush2.bf16.msra.mxu0 %v1807
        %2096 = vmatprep.subr.bf16.mxu0 %v1804
        %2097 = vmatpush2.bf16.msra.mxu0 %v1803
        %2098 = vmatprep.subr.bf16.mxu0 %v1800
        %2099 = vmatpush2.bf16.msra.mxu0 %v1799
        %2100 = vmatprep.subr.bf16.mxu0 %v1796
        %2101 = vmatpush2.bf16.msra.mxu0 %v1795
        %2102 = vmatprep.subr.bf16.mxu0 %v1792
        %2103 = vmatpush2.bf16.msra.mxu0 %v1791
        %2104 = vmatprep.subr.bf16.mxu0 %v1788
        %2105 = vmatpush2.bf16.msra.mxu0 %v1787
        %2106 = vmatprep.mubr.bf16.mxu0 %v1154
        %2107 = vmatmul.mubr.bf16.gmra.mxu0 %v1153
        %v2108 = vpop.f32.mrf.mxu0
        %v2109 = vadd.f32 %v2066, %v2108
        %v2110 = vpop.f32.mrf.mxu0
        %v2111 = vadd.f32 %v2068, %v2110
        %v2112 = vpop.f32.mrf.mxu0
        %v2113 = vadd.f32 %v2070, %v2112
        %v2114 = vpop.f32.mrf.mxu0
        %v2115 = vadd.f32 %v2072, %v2114
        %2116 = vdwg.mxu0
        %v2117 = vpack.c.bf16 %v2027, %v2023
        %v2118 = vpack.c.bf16 %v2029, %v2025
        %v2119 = vpack.c.bf16 %v2113, %v2109
        %v2120 = vpack.c.bf16 %v2115, %v2111
        %v2121 = vtanh.bf16.pop %v2117
        %v2122 = vtanh.bf16.pop %v2118
        %v2123 = vtanh.bf16.pop %v2119
        %v2124 = vtanh.bf16.pop %v2120
        %v2125 = vld [vmem:[#allocation5] sm:$0xf]
        %v2126 = vld [vmem:[#allocation5 + $0x4] sm:$0xf]
        %v2127 = vld [vmem:[#allocation5 + $0x8] sm:$0xf]
        %v2128 = vld [vmem:[#allocation5 + $0xc] sm:$0xf]
        %v2129 = vld [vmem:[#allocation5 + $0x10] sm:$0xf]
        %v2130 = vld [vmem:[#allocation5 + $0x14] sm:$0xf]
        %v2131 = vld [vmem:[#allocation5 + $0x18] sm:$0xf]
        %v2132 = vld [vmem:[#allocation5 + $0x1c] sm:$0xf]
        %v2133 = vld [vmem:[#allocation5 + $0x20] sm:$0xf]
        %v2134 = vld [vmem:[#allocation5 + $0x24] sm:$0xf]
        %v2135 = vld [vmem:[#allocation5 + $0x28] sm:$0xf]
        %v2136 = vld [vmem:[#allocation5 + $0x2c] sm:$0xf]
        %v2137 = vld [vmem:[#allocation5 + $0x30] sm:$0xf]
        %v2138 = vld [vmem:[#allocation5 + $0x34] sm:$0xf]
        %v2139 = vld [vmem:[#allocation5 + $0x38] sm:$0xf]
        %v2140 = vld [vmem:[#allocation5 + $0x3c] sm:$0xf]
        %v2141 = vld [vmem:[#allocation5 + $0x40] sm:$0xf]
        %v2142 = vld [vmem:[#allocation5 + $0x44] sm:$0xf]
        %v2143 = vld [vmem:[#allocation5 + $0x48] sm:$0xf]
        %v2144 = vld [vmem:[#allocation5 + $0x4c] sm:$0xf]
        %v2145 = vld [vmem:[#allocation5 + $0x50] sm:$0xf]
        %v2146 = vld [vmem:[#allocation5 + $0x54] sm:$0xf]
        %v2147 = vld [vmem:[#allocation5 + $0x58] sm:$0xf]
        %v2148 = vld [vmem:[#allocation5 + $0x5c] sm:$0xf]
        %v2149 = vld [vmem:[#allocation5 + $0x60] sm:$0xf]
        %v2150 = vld [vmem:[#allocation5 + $0x64] sm:$0xf]
        %v2151 = vld [vmem:[#allocation5 + $0x68] sm:$0xf]
        %v2152 = vld [vmem:[#allocation5 + $0x6c] sm:$0xf]
        %v2153 = vld [vmem:[#allocation5 + $0x70] sm:$0xf]
        %v2154 = vld [vmem:[#allocation5 + $0x74] sm:$0xf]
        %v2155 = vld [vmem:[#allocation5 + $0x78] sm:$0xf]
        %v2156 = vld [vmem:[#allocation5 + $0x7c] sm:$0xf]
        %v2157 = vld [vmem:[#allocation5 + $0x80] sm:$0xf]
        %v2158 = vld [vmem:[#allocation5 + $0x84] sm:$0xf]
        %v2159 = vld [vmem:[#allocation5 + $0x88] sm:$0xf]
        %v2160 = vld [vmem:[#allocation5 + $0x8c] sm:$0xf]
        %v2161 = vld [vmem:[#allocation5 + $0x90] sm:$0xf]
        %v2162 = vld [vmem:[#allocation5 + $0x94] sm:$0xf]
        %v2163 = vld [vmem:[#allocation5 + $0x98] sm:$0xf]
        %v2164 = vld [vmem:[#allocation5 + $0x9c] sm:$0xf]
        %v2165 = vld [vmem:[#allocation5 + $0xa0] sm:$0xf]
        %v2166 = vld [vmem:[#allocation5 + $0xa4] sm:$0xf]
        %v2167 = vld [vmem:[#allocation5 + $0xa8] sm:$0xf]
        %v2168 = vld [vmem:[#allocation5 + $0xac] sm:$0xf]
        %v2169 = vld [vmem:[#allocation5 + $0xb0] sm:$0xf]
        %v2170 = vld [vmem:[#allocation5 + $0xb4] sm:$0xf]
        %v2171 = vld [vmem:[#allocation5 + $0xb8] sm:$0xf]
        %v2172 = vld [vmem:[#allocation5 + $0xbc] sm:$0xf]
        %v2173 = vld [vmem:[#allocation5 + $0xc0] sm:$0xf]
        %v2174 = vld [vmem:[#allocation5 + $0xc4] sm:$0xf]
        %v2175 = vld [vmem:[#allocation5 + $0xc8] sm:$0xf]
        %v2176 = vld [vmem:[#allocation5 + $0xcc] sm:$0xf]
        %v2177 = vld [vmem:[#allocation5 + $0xd0] sm:$0xf]
        %v2178 = vld [vmem:[#allocation5 + $0xd4] sm:$0xf]
        %v2179 = vld [vmem:[#allocation5 + $0xd8] sm:$0xf]
        %v2180 = vld [vmem:[#allocation5 + $0xdc] sm:$0xf]
        %v2181 = vld [vmem:[#allocation5 + $0xe0] sm:$0xf]
        %v2182 = vld [vmem:[#allocation5 + $0xe4] sm:$0xf]
        %v2183 = vld [vmem:[#allocation5 + $0xe8] sm:$0xf]
        %v2184 = vld [vmem:[#allocation5 + $0xec] sm:$0xf]
        %v2185 = vld [vmem:[#allocation5 + $0xf0] sm:$0xf]
        %v2186 = vld [vmem:[#allocation5 + $0xf4] sm:$0xf]
        %v2187 = vld [vmem:[#allocation5 + $0xf8] sm:$0xf]
        %v2188 = vld [vmem:[#allocation5 + $0xfc] sm:$0xf]
        %v2189 = vld [vmem:[%s9] sm:$0x1]
        %v2191 = vlaneseq
        %v2192 = vshrl.u32 %v2191, 7
        %v2193 = vsub.s32 0, %v2192
        %v2194 = vrot.slane %v2189, %v2193
        %v2260 = vunpack.c.l.b16 %v2125
        %v2261 = vunpack.c.l.b16 %v2126
        %v2262 = vunpack.c.l.b16 %v2127
        %v2263 = vunpack.c.l.b16 %v2128
        %v2264 = vunpack.c.l.b16 %v2129
        %v2265 = vunpack.c.l.b16 %v2130
        %v2266 = vunpack.c.l.b16 %v2131
        %v2267 = vunpack.c.l.b16 %v2132
        %v2268 = vunpack.c.l.b16 %v2133
        %v2269 = vunpack.c.l.b16 %v2134
        %v2270 = vunpack.c.l.b16 %v2135
        %v2271 = vunpack.c.l.b16 %v2136
        %v2272 = vunpack.c.l.b16 %v2137
        %v2273 = vunpack.c.l.b16 %v2138
        %v2274 = vunpack.c.l.b16 %v2139
        %v2275 = vunpack.c.l.b16 %v2140
        %v2276 = vunpack.c.l.b16 %v2141
        %v2277 = vunpack.c.l.b16 %v2142
        %v2278 = vunpack.c.l.b16 %v2143
        %v2279 = vunpack.c.l.b16 %v2144
        %v2280 = vunpack.c.l.b16 %v2145
        %v2281 = vunpack.c.l.b16 %v2146
        %v2282 = vunpack.c.l.b16 %v2147
        %v2283 = vunpack.c.l.b16 %v2148
        %v2284 = vunpack.c.l.b16 %v2149
        %v2285 = vunpack.c.l.b16 %v2150
        %v2286 = vunpack.c.l.b16 %v2151
        %v2287 = vunpack.c.l.b16 %v2152
        %v2288 = vunpack.c.l.b16 %v2153
        %v2289 = vunpack.c.l.b16 %v2154
        %v2290 = vunpack.c.l.b16 %v2155
        %v2291 = vunpack.c.l.b16 %v2156
        %v2292 = vunpack.c.l.b16 %v2157
        %v2293 = vunpack.c.l.b16 %v2158
        %v2294 = vunpack.c.l.b16 %v2159
        %v2295 = vunpack.c.l.b16 %v2160
        %v2296 = vunpack.c.l.b16 %v2161
        %v2297 = vunpack.c.l.b16 %v2162
        %v2298 = vunpack.c.l.b16 %v2163
        %v2299 = vunpack.c.l.b16 %v2164
        %v2300 = vunpack.c.l.b16 %v2165
        %v2301 = vunpack.c.l.b16 %v2166
        %v2302 = vunpack.c.l.b16 %v2167
        %v2303 = vunpack.c.l.b16 %v2168
        %v2304 = vunpack.c.l.b16 %v2169
        %v2305 = vunpack.c.l.b16 %v2170
        %v2306 = vunpack.c.l.b16 %v2171
        %v2307 = vunpack.c.l.b16 %v2172
        %v2308 = vunpack.c.l.b16 %v2173
        %v2309 = vunpack.c.l.b16 %v2174
        %v2310 = vunpack.c.l.b16 %v2175
        %v2311 = vunpack.c.l.b16 %v2176
        %v2312 = vunpack.c.l.b16 %v2177
        %v2313 = vunpack.c.l.b16 %v2178
        %v2314 = vunpack.c.l.b16 %v2179
        %v2315 = vunpack.c.l.b16 %v2180
        %v2316 = vunpack.c.l.b16 %v2181
        %v2317 = vunpack.c.l.b16 %v2182
        %v2318 = vunpack.c.l.b16 %v2183
        %v2319 = vunpack.c.l.b16 %v2184
        %v2320 = vunpack.c.l.b16 %v2185
        %v2321 = vunpack.c.l.b16 %v2186
        %v2322 = vunpack.c.l.b16 %v2187
        %v2323 = vunpack.c.l.b16 %v2188
        %v2324 = vpack.c.b16 %v2261, %v2260
        %v2325 = vpack.c.b16 %v2263, %v2262
        %v2326 = vpack.c.b16 %v2265, %v2264
        %v2327 = vpack.c.b16 %v2267, %v2266
        %v2328 = vpack.c.b16 %v2269, %v2268
        %v2329 = vpack.c.b16 %v2271, %v2270
        %v2330 = vpack.c.b16 %v2273, %v2272
        %v2331 = vpack.c.b16 %v2275, %v2274
        %v2332 = vpack.c.b16 %v2277, %v2276
        %v2333 = vpack.c.b16 %v2279, %v2278
        %v2334 = vpack.c.b16 %v2281, %v2280
        %v2335 = vpack.c.b16 %v2283, %v2282
        %v2336 = vpack.c.b16 %v2285, %v2284
        %v2337 = vpack.c.b16 %v2287, %v2286
        %v2338 = vpack.c.b16 %v2289, %v2288
        %v2339 = vpack.c.b16 %v2291, %v2290
        %v2340 = vpack.c.b16 %v2293, %v2292
        %v2341 = vpack.c.b16 %v2295, %v2294
        %v2342 = vpack.c.b16 %v2297, %v2296
        %v2343 = vpack.c.b16 %v2299, %v2298
        %v2344 = vpack.c.b16 %v2301, %v2300
        %v2345 = vpack.c.b16 %v2303, %v2302
        %v2346 = vpack.c.b16 %v2305, %v2304
        %v2347 = vpack.c.b16 %v2307, %v2306
        %v2348 = vpack.c.b16 %v2309, %v2308
        %v2349 = vpack.c.b16 %v2311, %v2310
        %v2350 = vpack.c.b16 %v2313, %v2312
        %v2351 = vpack.c.b16 %v2315, %v2314
        %v2352 = vpack.c.b16 %v2317, %v2316
        %v2353 = vpack.c.b16 %v2319, %v2318
        %v2354 = vpack.c.b16 %v2321, %v2320
        %v2355 = vpack.c.b16 %v2323, %v2322
        %2388 = vmatprep.subr.bf16.mxu0 0
        %2389 = vmatpush1.bf16.msra.mxu0 %v2331
        %2390 = vmatprep.subr.bf16.mxu0 0
        %2391 = vmatpush1.bf16.msra.mxu0 %v2330
        %2392 = vmatprep.subr.bf16.mxu0 0
        %2393 = vmatpush1.bf16.msra.mxu0 %v2329
        %2394 = vmatprep.subr.bf16.mxu0 0
        %2395 = vmatpush1.bf16.msra.mxu0 %v2328
        %2396 = vmatprep.subr.bf16.mxu0 0
        %2397 = vmatpush1.bf16.msra.mxu0 %v2327
        %2398 = vmatprep.subr.bf16.mxu0 0
        %2399 = vmatpush1.bf16.msra.mxu0 %v2326
        %2400 = vmatprep.subr.bf16.mxu0 0
        %2401 = vmatpush1.bf16.msra.mxu0 %v2325
        %2402 = vmatprep.subr.bf16.mxu0 0
        %2403 = vmatpush1.bf16.msra.mxu0 %v2324
        %2404 = vmatprep.subr.bf16.mxu0 0
        %2405 = vmatpush2.bf16.msra.mxu0 %v2339
        %2406 = vmatprep.subr.bf16.mxu0 0
        %2407 = vmatpush2.bf16.msra.mxu0 %v2338
        %2408 = vmatprep.subr.bf16.mxu0 0
        %2409 = vmatpush2.bf16.msra.mxu0 %v2337
        %2410 = vmatprep.subr.bf16.mxu0 0
        %2411 = vmatpush2.bf16.msra.mxu0 %v2336
        %2412 = vmatprep.subr.bf16.mxu0 0
        %2413 = vmatpush2.bf16.msra.mxu0 %v2335
        %2414 = vmatprep.subr.bf16.mxu0 0
        %2415 = vmatpush2.bf16.msra.mxu0 %v2334
        %2416 = vmatprep.subr.bf16.mxu0 0
        %2417 = vmatpush2.bf16.msra.mxu0 %v2333
        %2418 = vmatprep.subr.bf16.mxu0 0
        %2419 = vmatpush2.bf16.msra.mxu0 %v2332
        %2420 = vmatprep.mubr.bf16.mxu0 %v2122
        %2421 = vmatmul.mubr.bf16.gmra.mxu0 %v2121
        %v2422 = vpop.f32.mrf.mxu0
        %v2423 = vadd.f32 %v2194, %v2422
        %v2424 = vpop.f32.mrf.mxu0
        %v2425 = vpop.f32.mrf.mxu0
        %v2426 = vadd.f32 %v2194, %v2425
        %v2427 = vpop.f32.mrf.mxu0
        %2428 = vdwg.mxu0
        %2429 = vmatprep.subr.bf16.mxu0 0
        %2430 = vmatpush1.bf16.msra.mxu0 %v2347
        %2431 = vmatprep.subr.bf16.mxu0 0
        %2432 = vmatpush1.bf16.msra.mxu0 %v2346
        %2433 = vmatprep.subr.bf16.mxu0 0
        %2434 = vmatpush1.bf16.msra.mxu0 %v2345
        %2435 = vmatprep.subr.bf16.mxu0 0
        %2436 = vmatpush1.bf16.msra.mxu0 %v2344
        %2437 = vmatprep.subr.bf16.mxu0 0
        %2438 = vmatpush1.bf16.msra.mxu0 %v2343
        %2439 = vmatprep.subr.bf16.mxu0 0
        %2440 = vmatpush1.bf16.msra.mxu0 %v2342
        %2441 = vmatprep.subr.bf16.mxu0 0
        %2442 = vmatpush1.bf16.msra.mxu0 %v2341
        %2443 = vmatprep.subr.bf16.mxu0 0
        %2444 = vmatpush1.bf16.msra.mxu0 %v2340
        %2445 = vmatprep.subr.bf16.mxu0 0
        %2446 = vmatpush2.bf16.msra.mxu0 %v2355
        %2447 = vmatprep.subr.bf16.mxu0 0
        %2448 = vmatpush2.bf16.msra.mxu0 %v2354
        %2449 = vmatprep.subr.bf16.mxu0 0
        %2450 = vmatpush2.bf16.msra.mxu0 %v2353
        %2451 = vmatprep.subr.bf16.mxu0 0
        %2452 = vmatpush2.bf16.msra.mxu0 %v2352
        %2453 = vmatprep.subr.bf16.mxu0 0
        %2454 = vmatpush2.bf16.msra.mxu0 %v2351
        %2455 = vmatprep.subr.bf16.mxu0 0
        %2456 = vmatpush2.bf16.msra.mxu0 %v2350
        %2457 = vmatprep.subr.bf16.mxu0 0
        %2458 = vmatpush2.bf16.msra.mxu0 %v2349
        %2459 = vmatprep.subr.bf16.mxu0 0
        %2460 = vmatpush2.bf16.msra.mxu0 %v2348
        %2461 = vmatprep.mubr.bf16.mxu0 %v2124
        %2462 = vmatmul.mubr.bf16.gmra.mxu0 %v2123
        %v2463 = vpop.f32.mrf.mxu0
        %v2464 = vadd.f32 %v2423, %v2463
        %v2465 = vpop.f32.mrf.mxu0
        %v2466 = vpop.f32.mrf.mxu0
        %v2467 = vadd.f32 %v2426, %v2466
        %v2468 = vpop.f32.mrf.mxu0
        %2469 = vdwg.mxu0
        %2470 = vst [vmem:[%s383] sm:$0xff] %v2464
        %2471 = vst [vmem:[%s383 + $0x8] sm:$0xff] %v2467
        %s2472 = sand.u32 %s249, 1
        %s2473 = scalar_lea.sflag [#allocation4], %s2472
        %s2474 = sand.u32 %s249, 1
        %s2475 = smul.addr %s2474, 16
        %s2476 = scalar_lea.vmem [#allocation7], %s2475
        // Predicated region
        $region69: #{tpu_custom_call.1} parent=59 // pred_check
          %p2477 = pneg %p259
        $region70: #{tpu_custom_call.1} parent=59 // pred_check_branch
          %2479 = sbr.rel (%p2477) target = $region72
        $region71: #{tpu_custom_call.1} parent=59 // pred_region
          %s2480 = smul.u32 2, %s26
          %s2482 = ssub.s32 256, 256
          %2483 = vsyncadd %s2473, %s2482
          %s2484 = smul.addr %s2480, 128
          %s2485 = scalar_lea.hbm %s10, %s2484
          %s2486 = sshll.u32 %s2476, 4
          %s2487 = int_to_ptr.vmem [resolvable:$true] %s2486
          %2492 = dma.vmem_to_hbm [thread:$0]  %s2487, 256, %s2485, %s2473, 128, 128, 8
        $region72: #{tpu_custom_call.1} parent=59 // pred_fallthru
          _
      $region60: #{tpu_custom_call.1} parent=5 // pred_fallthru
        _
      %p2493 = scmp.le.s32.totalorder 2, %s21
      // Predicated region
      $region73: #{tpu_custom_call.1} parent=5 // pred_check
        %p2494 = pneg %p2493
      $region74: #{tpu_custom_call.1} parent=5 // pred_check_branch
        %2496 = sbr.rel (%p2494) target = $region76
      $region75: #{tpu_custom_call.1} parent=5 // pred_region
        %s2497 = ssub.s32 %s21, 2
        // Predicated region
        $region77: #{tpu_custom_call.1} parent=75 // pred_check
          %p2498 = pneg %p265
        $region78: #{tpu_custom_call.1} parent=75 // pred_check_branch
          %2500 = sbr.rel (%p2498) target = $region80
        $region79: #{tpu_custom_call.1} parent=75 // pred_region
          %s2501 = sand.u32 %s250, 1
          %s2502 = scalar_lea.sflag [#allocation4], %s2501
          %s2503 = sand.u32 %s250, 1
          %s2504 = smul.addr %s2503, 16
          %s2505 = scalar_lea.vmem [#allocation7], %s2504
          %2506 = dma.done %s2502, 256
        $region80: #{tpu_custom_call.1} parent=75 // pred_fallthru
          _
      $region76: #{tpu_custom_call.1} parent=5 // pred_fallthru
        _
    $region6: #{tpu_custom_call.1} parent=1 // loop_footer
      %s25 = sadd.s32 1, %s21
    $region7: #{tpu_custom_call.1} parent=1 // loop_footer_branch
      %20 = sbr.rel target = $region3
    $region8: #{tpu_custom_call.1} parent=1 // loop_exit
      _
    %2507 = vsyncpa [#allocation3], 1
    %s2508 = scalar_lea.sflag [#allocation3], 1
    %2509 = vsyncpa %s2508, 1
    %2510 = vsyncpa [#allocation6], 1
    %2511 = vsyncpa [#allocation4], 1
    %s2512 = scalar_lea.sflag [#allocation4], 1
    %2513 = vsyncpa %s2512, 1

</llo_original>
